<compile_context>
chip_gen: v5e
topology: v5e:2x2
jax: 0.10.0
libtpu: 0.0.40
codegen_flags: <defaults>
</compile_context>

<pallas_src>
import functools

import numpy as np
import jax
import jax.numpy as jnp
from jax import lax
from jax.experimental import pallas as pl
from jax.experimental.pallas import tpu as pltpu

_CHUNK = 256  # rows of the flattened image accumulated per register tile


def _rep_spec(shape):
    nd = len(shape)
    return pl.BlockSpec(tuple(shape), lambda b, _n=nd: (0,) * _n)


def _compiler_params(per_step_bytes):
    limit = int(per_step_bytes) * 3 + (4 << 20)
    limit = max(8 << 20, min(limit, 100 << 20))
    return pltpu.CompilerParams(dimension_semantics=("parallel",),
                                vmem_limit_bytes=limit)


# ----------------------------------------------------------------------------
# Fused AMSFNV4 block kernel
#   branches: 3x3 (d=1) || 1x1 (packed into centre tap, N=2*cout) || 3x3 (d=2)
#   epilogue: ReLU -> K-split 1x1 fuse matmul -> ReLU
# Input is the per-image padded (p=2, +1 extra bottom row) flattened activation
# so every tap is a statically-offset contiguous window.
# ----------------------------------------------------------------------------
def _amsfn_kernel(x_ref, w1_ref, b1_ref, w2_ref, b2_ref, wf1_ref, wf2_ref,
                  bf_ref, o_ref, *, H, W, Wp, chunk):
    del W
    M = H * Wp
    offs1 = tuple((1 + ky) * Wp + (1 + kx) for ky in range(3) for kx in range(3))
    offs2 = tuple(2 * ky * Wp + 2 * kx for ky in range(3) for kx in range(3))
    n1 = b1_ref.shape[-1]
    n2 = b2_ref.shape[-1]
    for cs in range(0, M, chunk):
        sz = min(chunk, M - cs)
        acc1 = jnp.zeros((sz, n1), jnp.float32)
        acc2 = jnp.zeros((sz, n2), jnp.float32)
        for t in range(9):
            acc1 = acc1 + jnp.dot(x_ref[0, pl.ds(offs1[t] + cs, sz), :],
                                  w1_ref[t], preferred_element_type=jnp.float32)
            acc2 = acc2 + jnp.dot(x_ref[0, pl.ds(offs2[t] + cs, sz), :],
                                  w2_ref[t], preferred_element_type=jnp.float32)
        r1 = jnp.maximum(acc1 + b1_ref[...], 0.0).astype(jnp.bfloat16)
        r2 = jnp.maximum(acc2 + b2_ref[...], 0.0).astype(jnp.bfloat16)
        fuse = (jnp.dot(r1, wf1_ref[...], preferred_element_type=jnp.float32)
                + jnp.dot(r2, wf2_ref[...], preferred_element_type=jnp.float32)
                + bf_ref[...])
        o_ref[0, pl.ds(cs, sz), :] = jnp.maximum(fuse, 0.0).astype(o_ref.dtype)


def amsfn_block(p, x):
    """Whole AMSFNV4 block in one pallas_call.  x: (B,H,W,Cin) bf16."""
    B, H, W, Cin = x.shape
    Wp, Lp = W + 4, (H + 5) * (W + 4)
    M = H * Wp
    cout = int(p["bf"].shape[-1])
    chunk = min(_CHUNK, M)

    xp = jnp.pad(x, ((0, 0), (2, 3), (2, 2), (0, 0))).reshape(B, Lp, Cin)

    args = [xp, p["w1"], p["b1"], p["w2"], p["b2"], p["wf1"], p["wf2"], p["bf"]]
    in_specs = [pl.BlockSpec((1, Lp, Cin), lambda b: (b, 0, 0))]
    in_specs += [_rep_spec(a.shape) for a in args[1:]]

    n1 = int(p["w1"].shape[-1])
    flops = 2 * B * M * Cin * 9 * (n1 + cout) + 2 * B * M * cout * (n1 + cout)
    bytes_acc = (sum(int(a.size) * a.dtype.itemsize for a in args)
                 + B * M * cout * 2)
    weight_bytes = sum(int(a.size) * a.dtype.itemsize for a in args[1:])
    per_step = (Lp * Cin + M * cout) * 2 + weight_bytes

    out = pl.pallas_call(
        functools.partial(_amsfn_kernel, H=H, W=W, Wp=Wp, chunk=chunk),
        out_shape=jax.ShapeDtypeStruct((B, M, cout), jnp.bfloat16),
        grid_spec=pltpu.PrefetchScalarGridSpec(
            num_scalar_prefetch=0,
            grid=(B,),
            in_specs=in_specs,
            out_specs=pl.BlockSpec((1, M, cout), lambda b: (b, 0, 0))),
        compiler_params=_compiler_params(2 * per_step),
        cost_estimate=pl.CostEstimate(flops=int(flops), transcendentals=0,
                                      bytes_accessed=int(bytes_acc)),
    )(*args)
    return out.reshape(B, H, Wp, cout)[:, :, :W, :]


# ----------------------------------------------------------------------------
# Fused Att_AWConv block kernel
#   stage 1: g_j = x_j * sigmoid(sum_i x_i @ Wg_ij + bg_j)   (gate, K-split over
#            the [d, skip] inputs -> the decoder concat never hits HBM)
#   stage 2: h = relu(3x3 conv(g)), garbage columns masked, written back into a
#            zero-haloed padded VMEM buffer
#   stage 3: out = relu(3x3 conv(h))
# Inputs are padded (p=1, +1 extra bottom row) flattened activations.
# ----------------------------------------------------------------------------
def _att_kernel(*refs, num_in, H, W, Wp, chunk):
    del W
    M = H * Wp
    Lp = refs[0].shape[1]
    idx = 0
    x_refs = refs[idx:idx + num_in]; idx += num_in
    mask_ref = refs[idx]; idx += 1
    gw = [[refs[idx + i * num_in + j] for j in range(num_in)]
          for i in range(num_in)]
    idx += num_in * num_in
    gb = refs[idx:idx + num_in]; idx += num_in
    c1w = refs[idx:idx + num_in]; idx += num_in
    c1b = refs[idx]; idx += 1
    c2w = refs[idx]; idx += 1
    c2b = refs[idx]; idx += 1
    o_ref = refs[idx]; idx += 1
    g_bufs = refs[idx:idx + num_in]; idx += num_in
    h_buf = refs[idx]

    cout = c1b.shape[-1]
    offs = tuple(ky * Wp + kx for ky in range(3) for kx in range(3))

    # ---- stage 1: gate (computed on the padded layout; halos stay zero
    #       because x is zero there).
    for cs in range(0, Lp, chunk):
        sz = min(chunk, Lp - cs)
        xs = [x_refs[i][0, pl.ds(cs, sz), :] for i in range(num_in)]
        for j in range(num_in):
            acc = jnp.zeros((sz, gb[j].shape[-1]), jnp.float32)
            for i in range(num_in):
                acc = acc + jnp.dot(xs[i], gw[i][j][...],
                                    preferred_element_type=jnp.float32)
            g = xs[j].astype(jnp.float32) * jax.nn.sigmoid(acc + gb[j][...])
            g_bufs[j][pl.ds(cs, sz), :] = g.astype(g_bufs[j].dtype)

    # ---- stage 2: c1 = relu(3x3(g)); mask garbage cols so the halo columns of
    #       the padded intermediate stay zero for stage 3.
    h_buf[...] = jnp.zeros(h_buf.shape, h_buf.dtype)
    for cs in range(0, M, chunk):
        sz = min(chunk, M - cs)
        acc = jnp.zeros((sz, cout), jnp.float32)
        for i in range(num_in):
            for t in range(9):
                acc = acc + jnp.dot(g_bufs[i][pl.ds(offs[t] + cs, sz), :],
                                    c1w[i][t],
                                    preferred_element_type=jnp.float32)
        h = jnp.maximum(acc + c1b[...], 0.0) * mask_ref[pl.ds(cs, sz), :]
        h_buf[pl.ds(Wp + 1 + cs, sz), :] = h.astype(h_buf.dtype)

    # ---- stage 3: out = relu(3x3(h)).
    for cs in range(0, M, chunk):
        sz = min(chunk, M - cs)
        acc = jnp.zeros((sz, cout), jnp.float32)
        for t in range(9):
            acc = acc + jnp.dot(h_buf[pl.ds(offs[t] + cs, sz), :], c2w[t],
                                preferred_element_type=jnp.float32)
        o_ref[0, pl.ds(cs, sz), :] = (
            jnp.maximum(acc + c2b[...], 0.0).astype(o_ref.dtype))


def att_block(p, xs):
    """Whole Att_AWConv block in one pallas_call.
    xs: list of (B,H,W,C_i) bf16 parts (decoder passes [d, skip])."""
    num_in = len(xs)
    B, H, W, _ = xs[0].shape
    Wp, Lp = W + 2, (H + 3) * (W + 2)
    M = H * Wp
    in_ch = [int(x.shape[-1]) for x in xs]
    cout = int(p["c1_b"].shape[-1])
    chunk = min(_CHUNK, M)

    xps = [jnp.pad(x, ((0, 0), (1, 2), (1, 1), (0, 0))).reshape(B, Lp, c)
           for x, c in zip(xs, in_ch)]
    # Static garbage-column mask (flattened conv rows with ox >= W land on halo
    # columns of the padded intermediate and must be zero).
    col = np.arange(M) % Wp
    mask = jnp.asarray((col < W).astype(np.float32).reshape(M, 1))

    args = list(xps) + [mask]
    for i in range(num_in):
        for j in range(num_in):
            args.append(p["gate_w"][i][j])
    args += list(p["gate_b"]) + list(p["c1_w"])
    args += [p["c1_b"], p["c2_w"], p["c2_b"]]

    in_specs = [pl.BlockSpec((1, Lp, c), lambda b: (b, 0, 0)) for c in in_ch]
    in_specs += [_rep_spec(a.shape) for a in args[num_in:]]

    scratch = [pltpu.VMEM((Lp, c), jnp.bfloat16) for c in in_ch]
    scratch += [pltpu.VMEM((Lp, cout), jnp.bfloat16)]

    cin_tot = sum(in_ch)
    flops = 2 * B * (Lp * cin_tot * cin_tot + 9 * M * cin_tot * cout
                     + 9 * M * cout * cout)
    bytes_acc = (sum(int(a.size) * a.dtype.itemsize for a in args)
                 + B * M * cout * 2)
    weight_bytes = sum(int(a.size) * a.dtype.itemsize for a in args[num_in:])
    per_step = (sum(Lp * c for c in in_ch) * 2 * 2    # inputs + gate scratch
                + Lp * cout * 2 + M * cout * 2 + weight_bytes)

    out = pl.pallas_call(
        functools.partial(_att_kernel, num_in=num_in, H=H, W=W, Wp=Wp,
                          chunk=chunk),
        out_shape=jax.ShapeDtypeStruct((B, M, cout), jnp.bfloat16),
        grid_spec=pltpu.PrefetchScalarGridSpec(
            num_scalar_prefetch=0,
            grid=(B,),
            in_specs=in_specs,
            out_specs=pl.BlockSpec((1, M, cout), lambda b: (b, 0, 0)),
            scratch_shapes=scratch),
        compiler_params=_compiler_params(2 * per_step),
        cost_estimate=pl.CostEstimate(flops=int(flops),
                                      transcendentals=int(B * Lp * cin_tot),
                                      bytes_accessed=int(bytes_acc)),
    )(*args)
    return out.reshape(B, H, Wp, cout)[:, :, :W, :]


# ----------------------------------------------------------------------------
# Spatial glue (plain XLA): 2x2 maxpool, 2x bilinear upsample (align_corners=True)
# as two tiny dense matmuls (no gather HLOs).
# ----------------------------------------------------------------------------
def maxpool2(x):
    B, H, W, C = x.shape
    return jnp.max(x.reshape(B, H // 2, 2, W // 2, 2, C), axis=(2, 4))


def _up_matrix(n):
    no = 2 * n
    U = np.zeros((no, n), np.float32)
    if n == 1:
        U[:, 0] = 1.0
        return U
    s = np.arange(no) * (n - 1) / (no - 1)
    i0 = np.floor(s).astype(np.int64)
    i1 = np.minimum(i0 + 1, n - 1)
    w = (s - i0).astype(np.float32)
    U[np.arange(no), i0] += 1.0 - w
    U[np.arange(no), i1] += w
    return U


def upsample2_bilinear(x):
    B, H, W, C = x.shape
    Uy = jnp.asarray(_up_matrix(H))
    Ux = jnp.asarray(_up_matrix(W))
    y = jnp.einsum('oh,bhwc->bowc', Uy, x.astype(jnp.float32))
    z = jnp.einsum('pw,bowc->bopc', Ux, y)
    return z.astype(x.dtype)


# ----------------------------------------------------------------------------
# Parameter construction (deterministic; no checkpoint available)
# ----------------------------------------------------------------------------
class KeyGen:
    def __init__(self, seed=0):
        self.key = jax.random.PRNGKey(seed)

    def __call__(self):
        self.key, sub = jax.random.split(self.key)
        return sub


def amsfn_p(kg, cin, cout, scale=0.05):
    w3x3 = jax.random.normal(kg(), (9, cin, cout), jnp.float32) * scale
    w1x1 = jax.random.normal(kg(), (cin, cout), jnp.float32) * scale
    w1_pack = jnp.concatenate(
        [w3x3, jnp.zeros((9, cin, cout), jnp.float32).at[4].set(w1x1)], axis=-1)
    w2 = jax.random.normal(kg(), (9, cin, cout), jnp.float32) * scale
    wf = jax.random.normal(kg(), (3 * cout, cout), jnp.float32) * scale
    wf1 = jnp.concatenate([wf[:cout], wf[2 * cout:]], axis=0)   # [b3x3 | b1x1]
    wf2 = wf[cout:2 * cout]                                     # [b3x3 d=2]
    return {
        "w1": w1_pack.astype(jnp.bfloat16),
        "b1": jnp.zeros((1, 2 * cout), jnp.float32),
        "w2": w2.astype(jnp.bfloat16),
        "b2": jnp.zeros((1, cout), jnp.float32),
        "wf1": wf1.astype(jnp.bfloat16),
        "wf2": wf2.astype(jnp.bfloat16),
        "bf": jnp.zeros((1, cout), jnp.float32),
    }


def att_p(kg, c_parts, cout, scale=0.05):
    num = len(c_parts)
    gate_w = [[(jax.random.normal(kg(), (c_parts[i], c_parts[j]), jnp.float32)
                * scale).astype(jnp.bfloat16) for j in range(num)]
              for i in range(num)]
    gate_b = [jnp.zeros((1, c_parts[j]), jnp.float32) for j in range(num)]
    c1_w = [(jax.random.normal(kg(), (9, c_parts[i], cout), jnp.float32)
             * scale).astype(jnp.bfloat16) for i in range(num)]
    return {
        "gate_w": gate_w, "gate_b": gate_b,
        "c1_w": c1_w, "c1_b": jnp.zeros((1, cout), jnp.float32),
        "c2_w": (jax.random.normal(kg(), (9, cout, cout), jnp.float32)
                 * scale).astype(jnp.bfloat16),
        "c2_b": jnp.zeros((1, cout), jnp.float32),
    }


def build_params(in_channels, num_classes, base_channels):
    kg = KeyGen(0)
    bc = base_channels
    return {
        "enc1": amsfn_p(kg, in_channels, bc),
        "enc2": amsfn_p(kg, bc, bc * 2),
        "enc3": amsfn_p(kg, bc * 2, bc * 4),
        "enc4": amsfn_p(kg, bc * 4, bc * 8),
        "center": att_p(kg, (bc * 8,), bc * 8),
        "dec1": att_p(kg, (bc * 8, bc * 8), bc * 4),
        "dec2": att_p(kg, (bc * 4, bc * 4), bc * 2),
        "dec3": att_p(kg, (bc * 2, bc * 2), bc),
        "dec4": att_p(kg, (bc, bc), bc),
        "out_w": (jax.random.normal(kg(), (bc, num_classes), jnp.float32)
                  * 0.05).astype(jnp.bfloat16),
        "out_b": jnp.zeros((num_classes,), jnp.float32),
    }


# ----------------------------------------------------------------------------
# Full forward (Dropout2d layers are identity: inference / p = 0)
# ----------------------------------------------------------------------------
def a_unetv5_forward(params, x_nchw):
    x = jnp.transpose(x_nchw, (0, 2, 3, 1)).astype(jnp.bfloat16)  # NHWC

    x1 = amsfn_block(params["enc1"], x)
    x2 = amsfn_block(params["enc2"], maxpool2(x1))
    x3 = amsfn_block(params["enc3"], maxpool2(x2))
    x4 = amsfn_block(params["enc4"], maxpool2(x3))
    x5 = maxpool2(x4)

    c = att_block(params["center"], [x5])          # A_UNetV5 bottleneck

    d = upsample2_bilinear(c)
    d = att_block(params["dec1"], [d, x4])         # skip concat folded in-kernel
    d = upsample2_bilinear(d)
    d = att_block(params["dec2"], [d, x3])
    d = upsample2_bilinear(d)
    d = att_block(params["dec3"], [d, x2])
    d = upsample2_bilinear(d)
    d = att_block(params["dec4"], [d, x1])

    # final 1x1 conv (N=num_classes) is trivially small -> plain XLA einsum
    logits = (jnp.einsum('bhwc,cn->bhwn', d, params["out_w"],
                         preferred_element_type=jnp.float32)
              + params["out_b"])
    return jnp.transpose(logits, (0, 3, 1, 2))     # back to NCHW


# ----------------------------------------------------------------------------
# Correctness self-checks of the fused block kernels vs. pure-JAX references
# ----------------------------------------------------------------------------
def _conv3x3_ref(x, w_taps, dilation=1):
    w = w_taps.reshape(3, 3, w_taps.shape[1], w_taps.shape[2])
    return lax.conv_general_dilated(
        x, w, (1, 1), "SAME", rhs_dilation=(dilation, dilation),
        dimension_numbers=("NHWC", "HWIO", "NHWC"))


def _amsfn_ref(p, x):
    xf = x.astype(jnp.float32)
    r1 = jax.nn.relu(_conv3x3_ref(xf, p["w1"].astype(jnp.float32), 1)
                     + p["b1"][0])
    r2 = jax.nn.relu(_conv3x3_ref(xf, p["w2"].astype(jnp.float32), 2)
                     + p["b2"][0])
    out = (jnp.einsum('bhwc,cn->bhwn', r1, p["wf1"].astype(jnp.float32))
           + jnp.einsum('bhwc,cn->bhwn', r2, p["wf2"].astype(jnp.float32))
           + p["bf"][0])
    return jax.nn.relu(out)


def _att_ref(p, xs):
    xfs = [x.astype(jnp.float32) for x in xs]
    num = len(xs)
    gs = []
    for j in range(num):
        s = p["gate_b"][j][0]
        for i in range(num):
            s = s + jnp.einsum('bhwc,cn->bhwn', xfs[i],
                               p["gate_w"][i][j].astype(jnp.float32))
        gs.append(xfs[j] * jax.nn.sigmoid(s))
    h = p["c1_b"][0]
    for i in range(num):
        h = h + _conv3x3_ref(gs[i], p["c1_w"][i].astype(jnp.float32), 1)
    h = jax.nn.relu(h)
    return jax.nn.relu(_conv3x3_ref(h, p["c2_w"].astype(jnp.float32), 1)
                       + p["c2_b"][0])


def _self_test():
    kg = KeyGen(7)
    # AMSFN block (odd W exercises the garbage-column slicing).
    p = amsfn_p(kg, 5, 6, scale=0.1)
    x = jax.random.normal(kg(), (2, 8, 9, 5), jnp.float32).astype(jnp.bfloat16)
    err = float(jnp.max(jnp.abs(amsfn_block(p, x).astype(jnp.float32)
                                - _amsfn_ref(p, x))))
    assert err < 5e-2, f"AMSFN block mismatch: {err}"
    # Att_AWConv block: 1 input (bottleneck) and 2 inputs (decoder, folded concat).
    p1 = att_p(kg, (6,), 5, scale=0.1)
    y = jax.random.normal(kg(), (2, 6, 7, 6), jnp.float32).astype(jnp.bfloat16)
    err = float(jnp.max(jnp.abs(att_block(p1, [y]).astype(jnp.float32)
                                - _att_ref(p1, [y]))))
    assert err < 5e-2, f"Att block (1 input) mismatch: {err}"
    p2 = att_p(kg, (3, 5), 4, scale=0.1)
    a = jax.random.normal(kg(), (2, 6, 7, 3), jnp.float32).astype(jnp.bfloat16)
    b = jax.random.normal(kg(), (2, 6, 7, 5), jnp.float32).astype(jnp.bfloat16)
    err = float(jnp.max(jnp.abs(att_block(p2, [a, b]).astype(jnp.float32)
                                - _att_ref(p2, [a, b]))))
    assert err < 5e-2, f"Att block (2 inputs) mismatch: {err}"


if __name__ == "__main__":
    _self_test()

    IN_CHANNELS, NUM_CLASSES, BASE = 3, 2, 8
    params = build_params(IN_CHANNELS, NUM_CLASSES, BASE)

    x = jax.random.normal(jax.random.PRNGKey(0),
                          (2, IN_CHANNELS, 32, 32), jnp.float32)

    fwd = jax.jit(a_unetv5_forward)
    out = jax.block_until_ready(fwd(params, x))

    assert out.shape == (2, NUM_CLASSES, 32, 32), out.shape
    assert bool(jnp.all(jnp.isfinite(out)))
    print("KERNEL_OK")
</pallas_src>

<mosaic_0001>
module attributes {stable_mosaic.version = 11 : i64} {
  func.func @_amsfn_kernel(%arg0: i32, %arg1: memref<1x169x5xbf16, #tpu.memory_space<vmem>>, %arg2: memref<9x5x12xbf16, #tpu.memory_space<vmem>>, %arg3: memref<1x12xf32, #tpu.memory_space<vmem>>, %arg4: memref<9x5x6xbf16, #tpu.memory_space<vmem>>, %arg5: memref<1x6xf32, #tpu.memory_space<vmem>>, %arg6: memref<12x6xbf16, #tpu.memory_space<vmem>>, %arg7: memref<6x6xbf16, #tpu.memory_space<vmem>>, %arg8: memref<1x6xf32, #tpu.memory_space<vmem>>, %arg9: memref<1x104x6xbf16, #tpu.memory_space<vmem>>) attributes {dimension_semantics = [#tpu.dimension_semantics<parallel>], iteration_bounds = array<i64: 2>, scalar_prefetch = 0 : i64, scratch_operands = 0 : i64, tpu.core_type = #tpu.core_type<tc>, window_params = [{transform_indices = @transform_0, window_bounds = array<i64: 1, 169, 5>}, {pipeline_mode = #tpu.pipeline_mode<synchronous>, transform_indices = @transform_1, window_bounds = array<i64: 9, 5, 12>}, {pipeline_mode = #tpu.pipeline_mode<synchronous>, transform_indices = @transform_2, window_bounds = array<i64: 1, 12>}, {pipeline_mode = #tpu.pipeline_mode<synchronous>, transform_indices = @transform_3, window_bounds = array<i64: 9, 5, 6>}, {pipeline_mode = #tpu.pipeline_mode<synchronous>, transform_indices = @transform_4, window_bounds = array<i64: 1, 6>}, {pipeline_mode = #tpu.pipeline_mode<synchronous>, transform_indices = @transform_5, window_bounds = array<i64: 12, 6>}, {pipeline_mode = #tpu.pipeline_mode<synchronous>, transform_indices = @transform_6, window_bounds = array<i64: 6, 6>}, {pipeline_mode = #tpu.pipeline_mode<synchronous>, transform_indices = @transform_7, window_bounds = array<i64: 1, 6>}, {transform_indices = @transform_8, window_bounds = array<i64: 1, 104, 6>}]} {
    %cst = arith.constant 0.000000e+00 : f32
    %0 = vector.broadcast %cst : f32 to vector<104x12xf32>
    %cst_0 = arith.constant 0.000000e+00 : f32
    %1 = vector.broadcast %cst_0 : f32 to vector<104x6xf32>
    %c0 = arith.constant 0 : index
    %c14 = arith.constant 14 : index
    %c0_1 = arith.constant 0 : index
    %2 = vector.load %arg1[%c0, %c14, %c0_1] : memref<1x169x5xbf16, #tpu.memory_space<vmem>>, vector<1x104x5xbf16>
    %3 = vector.shape_cast %2 : vector<1x104x5xbf16> to vector<104x5xbf16>
    %c0_2 = arith.constant 0 : index
    %c0_3 = arith.constant 0 : index
    %c0_4 = arith.constant 0 : index
    %4 = vector.load %arg2[%c0_2, %c0_3, %c0_4] : memref<9x5x12xbf16, #tpu.memory_space<vmem>>, vector<1x5x12xbf16>
    %5 = vector.shape_cast %4 : vector<1x5x12xbf16> to vector<5x12xbf16>
    %cst_5 = arith.constant dense<0.000000e+00> : vector<104x12xf32>
    %6 = tpu.matmul %3, %5, %cst_5 {dimension_numbers = #tpu.dot_dimension_numbers<[1], [0], [0], [1], [0, 0, 1, 1], [], []>} : vector<104x5xbf16>, vector<5x12xbf16>, vector<104x12xf32> -> vector<104x12xf32>
    %7 = arith.addf %0, %6 : vector<104x12xf32>
    %c0_6 = arith.constant 0 : index
    %c0_7 = arith.constant 0 : index
    %c0_8 = arith.constant 0 : index
    %8 = vector.load %arg1[%c0_6, %c0_7, %c0_8] : memref<1x169x5xbf16, #tpu.memory_space<vmem>>, vector<1x104x5xbf16>
    %9 = vector.shape_cast %8 : vector<1x104x5xbf16> to vector<104x5xbf16>
    %c0_9 = arith.constant 0 : index
    %c0_10 = arith.constant 0 : index
    %c0_11 = arith.constant 0 : index
    %10 = vector.load %arg4[%c0_9, %c0_10, %c0_11] : memref<9x5x6xbf16, #tpu.memory_space<vmem>>, vector<1x5x6xbf16>
    %11 = vector.shape_cast %10 : vector<1x5x6xbf16> to vector<5x6xbf16>
    %cst_12 = arith.constant dense<0.000000e+00> : vector<104x6xf32>
    %12 = tpu.matmul %9, %11, %cst_12 {dimension_numbers = #tpu.dot_dimension_numbers<[1], [0], [0], [1], [0, 0, 1, 1], [], []>} : vector<104x5xbf16>, vector<5x6xbf16>, vector<104x6xf32> -> vector<104x6xf32>
    %13 = arith.addf %1, %12 : vector<104x6xf32>
    %c0_13 = arith.constant 0 : index
    %c15 = arith.constant 15 : index
    %c0_14 = arith.constant 0 : index
    %14 = vector.load %arg1[%c0_13, %c15, %c0_14] : memref<1x169x5xbf16, #tpu.memory_space<vmem>>, vector<1x104x5xbf16>
    %15 = vector.shape_cast %14 : vector<1x104x5xbf16> to vector<104x5xbf16>
    %c1 = arith.constant 1 : index
    %c0_15 = arith.constant 0 : index
    %c0_16 = arith.constant 0 : index
    %16 = vector.load %arg2[%c1, %c0_15, %c0_16] : memref<9x5x12xbf16, #tpu.memory_space<vmem>>, vector<1x5x12xbf16>
    %17 = vector.shape_cast %16 : vector<1x5x12xbf16> to vector<5x12xbf16>
    %cst_17 = arith.constant dense<0.000000e+00> : vector<104x12xf32>
    %18 = tpu.matmul %15, %17, %cst_17 {dimension_numbers = #tpu.dot_dimension_numbers<[1], [0], [0], [1], [0, 0, 1, 1], [], []>} : vector<104x5xbf16>, vector<5x12xbf16>, vector<104x12xf32> -> vector<104x12xf32>
    %19 = arith.addf %7, %18 : vector<104x12xf32>
    %c0_18 = arith.constant 0 : index
    %c2 = arith.constant 2 : index
    %c0_19 = arith.constant 0 : index
    %20 = vector.load %arg1[%c0_18, %c2, %c0_19] : memref<1x169x5xbf16, #tpu.memory_space<vmem>>, vector<1x104x5xbf16>
    %21 = vector.shape_cast %20 : vector<1x104x5xbf16> to vector<104x5xbf16>
    %c1_20 = arith.constant 1 : index
    %c0_21 = arith.constant 0 : index
    %c0_22 = arith.constant 0 : index
    %22 = vector.load %arg4[%c1_20, %c0_21, %c0_22] : memref<9x5x6xbf16, #tpu.memory_space<vmem>>, vector<1x5x6xbf16>
    %23 = vector.shape_cast %22 : vector<1x5x6xbf16> to vector<5x6xbf16>
    %cst_23 = arith.constant dense<0.000000e+00> : vector<104x6xf32>
    %24 = tpu.matmul %21, %23, %cst_23 {dimension_numbers = #tpu.dot_dimension_numbers<[1], [0], [0], [1], [0, 0, 1, 1], [], []>} : vector<104x5xbf16>, vector<5x6xbf16>, vector<104x6xf32> -> vector<104x6xf32>
    %25 = arith.addf %13, %24 : vector<104x6xf32>
    %c0_24 = arith.constant 0 : index
    %c16 = arith.constant 16 : index
    %c0_25 = arith.constant 0 : index
    %26 = vector.load %arg1[%c0_24, %c16, %c0_25] : memref<1x169x5xbf16, #tpu.memory_space<vmem>>, vector<1x104x5xbf16>
    %27 = vector.shape_cast %26 : vector<1x104x5xbf16> to vector<104x5xbf16>
    %c2_26 = arith.constant 2 : index
    %c0_27 = arith.constant 0 : index
    %c0_28 = arith.constant 0 : index
    %28 = vector.load %arg2[%c2_26, %c0_27, %c0_28] : memref<9x5x12xbf16, #tpu.memory_space<vmem>>, vector<1x5x12xbf16>
    %29 = vector.shape_cast %28 : vector<1x5x12xbf16> to vector<5x12xbf16>
    %cst_29 = arith.constant dense<0.000000e+00> : vector<104x12xf32>
    %30 = tpu.matmul %27, %29, %cst_29 {dimension_numbers = #tpu.dot_dimension_numbers<[1], [0], [0], [1], [0, 0, 1, 1], [], []>} : vector<104x5xbf16>, vector<5x12xbf16>, vector<104x12xf32> -> vector<104x12xf32>
    %31 = arith.addf %19, %30 : vector<104x12xf32>
    %c0_30 = arith.constant 0 : index
    %c4 = arith.constant 4 : index
    %c0_31 = arith.constant 0 : index
    %32 = vector.load %arg1[%c0_30, %c4, %c0_31] : memref<1x169x5xbf16, #tpu.memory_space<vmem>>, vector<1x104x5xbf16>
    %33 = vector.shape_cast %32 : vector<1x104x5xbf16> to vector<104x5xbf16>
    %c2_32 = arith.constant 2 : index
    %c0_33 = arith.constant 0 : index
    %c0_34 = arith.constant 0 : index
    %34 = vector.load %arg4[%c2_32, %c0_33, %c0_34] : memref<9x5x6xbf16, #tpu.memory_space<vmem>>, vector<1x5x6xbf16>
    %35 = vector.shape_cast %34 : vector<1x5x6xbf16> to vector<5x6xbf16>
    %cst_35 = arith.constant dense<0.000000e+00> : vector<104x6xf32>
    %36 = tpu.matmul %33, %35, %cst_35 {dimension_numbers = #tpu.dot_dimension_numbers<[1], [0], [0], [1], [0, 0, 1, 1], [], []>} : vector<104x5xbf16>, vector<5x6xbf16>, vector<104x6xf32> -> vector<104x6xf32>
    %37 = arith.addf %25, %36 : vector<104x6xf32>
    %c0_36 = arith.constant 0 : index
    %c27 = arith.constant 27 : index
    %c0_37 = arith.constant 0 : index
    %38 = vector.load %arg1[%c0_36, %c27, %c0_37] : memref<1x169x5xbf16, #tpu.memory_space<vmem>>, vector<1x104x5xbf16>
    %39 = vector.shape_cast %38 : vector<1x104x5xbf16> to vector<104x5xbf16>
    %c3 = arith.constant 3 : index
    %c0_38 = arith.constant 0 : index
    %c0_39 = arith.constant 0 : index
    %40 = vector.load %arg2[%c3, %c0_38, %c0_39] : memref<9x5x12xbf16, #tpu.memory_space<vmem>>, vector<1x5x12xbf16>
    %41 = vector.shape_cast %40 : vector<1x5x12xbf16> to vector<5x12xbf16>
    %cst_40 = arith.constant dense<0.000000e+00> : vector<104x12xf32>
    %42 = tpu.matmul %39, %41, %cst_40 {dimension_numbers = #tpu.dot_dimension_numbers<[1], [0], [0], [1], [0, 0, 1, 1], [], []>} : vector<104x5xbf16>, vector<5x12xbf16>, vector<104x12xf32> -> vector<104x12xf32>
    %43 = arith.addf %31, %42 : vector<104x12xf32>
    %c0_41 = arith.constant 0 : index
    %c26 = arith.constant 26 : index
    %c0_42 = arith.constant 0 : index
    %44 = vector.load %arg1[%c0_41, %c26, %c0_42] : memref<1x169x5xbf16, #tpu.memory_space<vmem>>, vector<1x104x5xbf16>
    %45 = vector.shape_cast %44 : vector<1x104x5xbf16> to vector<104x5xbf16>
    %c3_43 = arith.constant 3 : index
    %c0_44 = arith.constant 0 : index
    %c0_45 = arith.constant 0 : index
    %46 = vector.load %arg4[%c3_43, %c0_44, %c0_45] : memref<9x5x6xbf16, #tpu.memory_space<vmem>>, vector<1x5x6xbf16>
    %47 = vector.shape_cast %46 : vector<1x5x6xbf16> to vector<5x6xbf16>
    %cst_46 = arith.constant dense<0.000000e+00> : vector<104x6xf32>
    %48 = tpu.matmul %45, %47, %cst_46 {dimension_numbers = #tpu.dot_dimension_numbers<[1], [0], [0], [1], [0, 0, 1, 1], [], []>} : vector<104x5xbf16>, vector<5x6xbf16>, vector<104x6xf32> -> vector<104x6xf32>
    %49 = arith.addf %37, %48 : vector<104x6xf32>
    %c0_47 = arith.constant 0 : index
    %c28 = arith.constant 28 : index
    %c0_48 = arith.constant 0 : index
    %50 = vector.load %arg1[%c0_47, %c28, %c0_48] : memref<1x169x5xbf16, #tpu.memory_space<vmem>>, vector<1x104x5xbf16>
    %51 = vector.shape_cast %50 : vector<1x104x5xbf16> to vector<104x5xbf16>
    %c4_49 = arith.constant 4 : index
    %c0_50 = arith.constant 0 : index
    %c0_51 = arith.constant 0 : index
    %52 = vector.load %arg2[%c4_49, %c0_50, %c0_51] : memref<9x5x12xbf16, #tpu.memory_space<vmem>>, vector<1x5x12xbf16>
    %53 = vector.shape_cast %52 : vector<1x5x12xbf16> to vector<5x12xbf16>
    %cst_52 = arith.constant dense<0.000000e+00> : vector<104x12xf32>
    %54 = tpu.matmul %51, %53, %cst_52 {dimension_numbers = #tpu.dot_dimension_numbers<[1], [0], [0], [1], [0, 0, 1, 1], [], []>} : vector<104x5xbf16>, vector<5x12xbf16>, vector<104x12xf32> -> vector<104x12xf32>
    %55 = arith.addf %43, %54 : vector<104x12xf32>
    %c0_53 = arith.constant 0 : index
    %c28_54 = arith.constant 28 : index
    %c0_55 = arith.constant 0 : index
    %56 = vector.load %arg1[%c0_53, %c28_54, %c0_55] : memref<1x169x5xbf16, #tpu.memory_space<vmem>>, vector<1x104x5xbf16>
    %57 = vector.shape_cast %56 : vector<1x104x5xbf16> to vector<104x5xbf16>
    %c4_56 = arith.constant 4 : index
    %c0_57 = arith.constant 0 : index
    %c0_58 = arith.constant 0 : index
    %58 = vector.load %arg4[%c4_56, %c0_57, %c0_58] : memref<9x5x6xbf16, #tpu.memory_space<vmem>>, vector<1x5x6xbf16>
    %59 = vector.shape_cast %58 : vector<1x5x6xbf16> to vector<5x6xbf16>
    %cst_59 = arith.constant dense<0.000000e+00> : vector<104x6xf32>
    %60 = tpu.matmul %57, %59, %cst_59 {dimension_numbers = #tpu.dot_dimension_numbers<[1], [0], [0], [1], [0, 0, 1, 1], [], []>} : vector<104x5xbf16>, vector<5x6xbf16>, vector<104x6xf32> -> vector<104x6xf32>
    %61 = arith.addf %49, %60 : vector<104x6xf32>
    %c0_60 = arith.constant 0 : index
    %c29 = arith.constant 29 : index
    %c0_61 = arith.constant 0 : index
    %62 = vector.load %arg1[%c0_60, %c29, %c0_61] : memref<1x169x5xbf16, #tpu.memory_space<vmem>>, vector<1x104x5xbf16>
    %63 = vector.shape_cast %62 : vector<1x104x5xbf16> to vector<104x5xbf16>
    %c5 = arith.constant 5 : index
    %c0_62 = arith.constant 0 : index
    %c0_63 = arith.constant 0 : index
    %64 = vector.load %arg2[%c5, %c0_62, %c0_63] : memref<9x5x12xbf16, #tpu.memory_space<vmem>>, vector<1x5x12xbf16>
    %65 = vector.shape_cast %64 : vector<1x5x12xbf16> to vector<5x12xbf16>
    %cst_64 = arith.constant dense<0.000000e+00> : vector<104x12xf32>
    %66 = tpu.matmul %63, %65, %cst_64 {dimension_numbers = #tpu.dot_dimension_numbers<[1], [0], [0], [1], [0, 0, 1, 1], [], []>} : vector<104x5xbf16>, vector<5x12xbf16>, vector<104x12xf32> -> vector<104x12xf32>
    %67 = arith.addf %55, %66 : vector<104x12xf32>
    %c0_65 = arith.constant 0 : index
    %c30 = arith.constant 30 : index
    %c0_66 = arith.constant 0 : index
    %68 = vector.load %arg1[%c0_65, %c30, %c0_66] : memref<1x169x5xbf16, #tpu.memory_space<vmem>>, vector<1x104x5xbf16>
    %69 = vector.shape_cast %68 : vector<1x104x5xbf16> to vector<104x5xbf16>
    %c5_67 = arith.constant 5 : index
    %c0_68 = arith.constant 0 : index
    %c0_69 = arith.constant 0 : index
    %70 = vector.load %arg4[%c5_67, %c0_68, %c0_69] : memref<9x5x6xbf16, #tpu.memory_space<vmem>>, vector<1x5x6xbf16>
    %71 = vector.shape_cast %70 : vector<1x5x6xbf16> to vector<5x6xbf16>
    %cst_70 = arith.constant dense<0.000000e+00> : vector<104x6xf32>
    %72 = tpu.matmul %69, %71, %cst_70 {dimension_numbers = #tpu.dot_dimension_numbers<[1], [0], [0], [1], [0, 0, 1, 1], [], []>} : vector<104x5xbf16>, vector<5x6xbf16>, vector<104x6xf32> -> vector<104x6xf32>
    %73 = arith.addf %61, %72 : vector<104x6xf32>
    %c0_71 = arith.constant 0 : index
    %c40 = arith.constant 40 : index
    %c0_72 = arith.constant 0 : index
    %74 = vector.load %arg1[%c0_71, %c40, %c0_72] : memref<1x169x5xbf16, #tpu.memory_space<vmem>>, vector<1x104x5xbf16>
    %75 = vector.shape_cast %74 : vector<1x104x5xbf16> to vector<104x5xbf16>
    %c6 = arith.constant 6 : index
    %c0_73 = arith.constant 0 : index
    %c0_74 = arith.constant 0 : index
    %76 = vector.load %arg2[%c6, %c0_73, %c0_74] : memref<9x5x12xbf16, #tpu.memory_space<vmem>>, vector<1x5x12xbf16>
    %77 = vector.shape_cast %76 : vector<1x5x12xbf16> to vector<5x12xbf16>
    %cst_75 = arith.constant dense<0.000000e+00> : vector<104x12xf32>
    %78 = tpu.matmul %75, %77, %cst_75 {dimension_numbers = #tpu.dot_dimension_numbers<[1], [0], [0], [1], [0, 0, 1, 1], [], []>} : vector<104x5xbf16>, vector<5x12xbf16>, vector<104x12xf32> -> vector<104x12xf32>
    %79 = arith.addf %67, %78 : vector<104x12xf32>
    %c0_76 = arith.constant 0 : index
    %c52 = arith.constant 52 : index
    %c0_77 = arith.constant 0 : index
    %80 = vector.load %arg1[%c0_76, %c52, %c0_77] : memref<1x169x5xbf16, #tpu.memory_space<vmem>>, vector<1x104x5xbf16>
    %81 = vector.shape_cast %80 : vector<1x104x5xbf16> to vector<104x5xbf16>
    %c6_78 = arith.constant 6 : index
    %c0_79 = arith.constant 0 : index
    %c0_80 = arith.constant 0 : index
    %82 = vector.load %arg4[%c6_78, %c0_79, %c0_80] : memref<9x5x6xbf16, #tpu.memory_space<vmem>>, vector<1x5x6xbf16>
    %83 = vector.shape_cast %82 : vector<1x5x6xbf16> to vector<5x6xbf16>
    %cst_81 = arith.constant dense<0.000000e+00> : vector<104x6xf32>
    %84 = tpu.matmul %81, %83, %cst_81 {dimension_numbers = #tpu.dot_dimension_numbers<[1], [0], [0], [1], [0, 0, 1, 1], [], []>} : vector<104x5xbf16>, vector<5x6xbf16>, vector<104x6xf32> -> vector<104x6xf32>
    %85 = arith.addf %73, %84 : vector<104x6xf32>
    %c0_82 = arith.constant 0 : index
    %c41 = arith.constant 41 : index
    %c0_83 = arith.constant 0 : index
    %86 = vector.load %arg1[%c0_82, %c41, %c0_83] : memref<1x169x5xbf16, #tpu.memory_space<vmem>>, vector<1x104x5xbf16>
    %87 = vector.shape_cast %86 : vector<1x104x5xbf16> to vector<104x5xbf16>
    %c7 = arith.constant 7 : index
    %c0_84 = arith.constant 0 : index
    %c0_85 = arith.constant 0 : index
    %88 = vector.load %arg2[%c7, %c0_84, %c0_85] : memref<9x5x12xbf16, #tpu.memory_space<vmem>>, vector<1x5x12xbf16>
    %89 = vector.shape_cast %88 : vector<1x5x12xbf16> to vector<5x12xbf16>
    %cst_86 = arith.constant dense<0.000000e+00> : vector<104x12xf32>
    %90 = tpu.matmul %87, %89, %cst_86 {dimension_numbers = #tpu.dot_dimension_numbers<[1], [0], [0], [1], [0, 0, 1, 1], [], []>} : vector<104x5xbf16>, vector<5x12xbf16>, vector<104x12xf32> -> vector<104x12xf32>
    %91 = arith.addf %79, %90 : vector<104x12xf32>
    %c0_87 = arith.constant 0 : index
    %c54 = arith.constant 54 : index
    %c0_88 = arith.constant 0 : index
    %92 = vector.load %arg1[%c0_87, %c54, %c0_88] : memref<1x169x5xbf16, #tpu.memory_space<vmem>>, vector<1x104x5xbf16>
    %93 = vector.shape_cast %92 : vector<1x104x5xbf16> to vector<104x5xbf16>
    %c7_89 = arith.constant 7 : index
    %c0_90 = arith.constant 0 : index
    %c0_91 = arith.constant 0 : index
    %94 = vector.load %arg4[%c7_89, %c0_90, %c0_91] : memref<9x5x6xbf16, #tpu.memory_space<vmem>>, vector<1x5x6xbf16>
    %95 = vector.shape_cast %94 : vector<1x5x6xbf16> to vector<5x6xbf16>
    %cst_92 = arith.constant dense<0.000000e+00> : vector<104x6xf32>
    %96 = tpu.matmul %93, %95, %cst_92 {dimension_numbers = #tpu.dot_dimension_numbers<[1], [0], [0], [1], [0, 0, 1, 1], [], []>} : vector<104x5xbf16>, vector<5x6xbf16>, vector<104x6xf32> -> vector<104x6xf32>
    %97 = arith.addf %85, %96 : vector<104x6xf32>
    %c0_93 = arith.constant 0 : index
    %c42 = arith.constant 42 : index
    %c0_94 = arith.constant 0 : index
    %98 = vector.load %arg1[%c0_93, %c42, %c0_94] : memref<1x169x5xbf16, #tpu.memory_space<vmem>>, vector<1x104x5xbf16>
    %99 = vector.shape_cast %98 : vector<1x104x5xbf16> to vector<104x5xbf16>
    %c8 = arith.constant 8 : index
    %c0_95 = arith.constant 0 : index
    %c0_96 = arith.constant 0 : index
    %100 = vector.load %arg2[%c8, %c0_95, %c0_96] : memref<9x5x12xbf16, #tpu.memory_space<vmem>>, vector<1x5x12xbf16>
    %101 = vector.shape_cast %100 : vector<1x5x12xbf16> to vector<5x12xbf16>
    %cst_97 = arith.constant dense<0.000000e+00> : vector<104x12xf32>
    %102 = tpu.matmul %99, %101, %cst_97 {dimension_numbers = #tpu.dot_dimension_numbers<[1], [0], [0], [1], [0, 0, 1, 1], [], []>} : vector<104x5xbf16>, vector<5x12xbf16>, vector<104x12xf32> -> vector<104x12xf32>
    %103 = arith.addf %91, %102 : vector<104x12xf32>
    %c0_98 = arith.constant 0 : index
    %c56 = arith.constant 56 : index
    %c0_99 = arith.constant 0 : index
    %104 = vector.load %arg1[%c0_98, %c56, %c0_99] : memref<1x169x5xbf16, #tpu.memory_space<vmem>>, vector<1x104x5xbf16>
    %105 = vector.shape_cast %104 : vector<1x104x5xbf16> to vector<104x5xbf16>
    %c8_100 = arith.constant 8 : index
    %c0_101 = arith.constant 0 : index
    %c0_102 = arith.constant 0 : index
    %106 = vector.load %arg4[%c8_100, %c0_101, %c0_102] : memref<9x5x6xbf16, #tpu.memory_space<vmem>>, vector<1x5x6xbf16>
    %107 = vector.shape_cast %106 : vector<1x5x6xbf16> to vector<5x6xbf16>
    %cst_103 = arith.constant dense<0.000000e+00> : vector<104x6xf32>
    %108 = tpu.matmul %105, %107, %cst_103 {dimension_numbers = #tpu.dot_dimension_numbers<[1], [0], [0], [1], [0, 0, 1, 1], [], []>} : vector<104x5xbf16>, vector<5x6xbf16>, vector<104x6xf32> -> vector<104x6xf32>
    %109 = arith.addf %97, %108 : vector<104x6xf32>
    %c0_104 = arith.constant 0 : index
    %c0_105 = arith.constant 0 : index
    %110 = vector.load %arg3[%c0_104, %c0_105] : memref<1x12xf32, #tpu.memory_space<vmem>>, vector<1x12xf32>
    %111 = vector.broadcast %110 : vector<1x12xf32> to vector<104x12xf32>
    %112 = arith.addf %103, %111 : vector<104x12xf32>
    %cst_106 = arith.constant 0.000000e+00 : f32
    %113 = vector.broadcast %cst_106 : f32 to vector<104x12xf32>
    %114 = arith.maximumf %112, %113 : vector<104x12xf32>
    %115 = arith.truncf %114 : vector<104x12xf32> to vector<104x12xbf16>
    %c0_107 = arith.constant 0 : index
    %c0_108 = arith.constant 0 : index
    %116 = vector.load %arg5[%c0_107, %c0_108] : memref<1x6xf32, #tpu.memory_space<vmem>>, vector<1x6xf32>
    %117 = vector.broadcast %116 : vector<1x6xf32> to vector<104x6xf32>
    %118 = arith.addf %109, %117 : vector<104x6xf32>
    %cst_109 = arith.constant 0.000000e+00 : f32
    %119 = vector.broadcast %cst_109 : f32 to vector<104x6xf32>
    %120 = arith.maximumf %118, %119 : vector<104x6xf32>
    %121 = arith.truncf %120 : vector<104x6xf32> to vector<104x6xbf16>
    %c0_110 = arith.constant 0 : index
    %c0_111 = arith.constant 0 : index
    %122 = vector.load %arg6[%c0_110, %c0_111] : memref<12x6xbf16, #tpu.memory_space<vmem>>, vector<12x6xbf16>
    %cst_112 = arith.constant dense<0.000000e+00> : vector<104x6xf32>
    %123 = tpu.matmul %115, %122, %cst_112 {dimension_numbers = #tpu.dot_dimension_numbers<[1], [0], [0], [1], [0, 0, 1, 1], [], []>} : vector<104x12xbf16>, vector<12x6xbf16>, vector<104x6xf32> -> vector<104x6xf32>
    %c0_113 = arith.constant 0 : index
    %c0_114 = arith.constant 0 : index
    %124 = vector.load %arg7[%c0_113, %c0_114] : memref<6x6xbf16, #tpu.memory_space<vmem>>, vector<6x6xbf16>
    %cst_115 = arith.constant dense<0.000000e+00> : vector<104x6xf32>
    %125 = tpu.matmul %121, %124, %cst_115 {dimension_numbers = #tpu.dot_dimension_numbers<[1], [0], [0], [1], [0, 0, 1, 1], [], []>} : vector<104x6xbf16>, vector<6x6xbf16>, vector<104x6xf32> -> vector<104x6xf32>
    %126 = arith.addf %123, %125 : vector<104x6xf32>
    %c0_116 = arith.constant 0 : index
    %c0_117 = arith.constant 0 : index
    %127 = vector.load %arg8[%c0_116, %c0_117] : memref<1x6xf32, #tpu.memory_space<vmem>>, vector<1x6xf32>
    %128 = vector.broadcast %127 : vector<1x6xf32> to vector<104x6xf32>
    %129 = arith.addf %126, %128 : vector<104x6xf32>
    %cst_118 = arith.constant 0.000000e+00 : f32
    %130 = vector.broadcast %cst_118 : f32 to vector<104x6xf32>
    %131 = arith.maximumf %129, %130 : vector<104x6xf32>
    %132 = arith.truncf %131 : vector<104x6xf32> to vector<104x6xbf16>
    %c0_119 = arith.constant 0 : index
    %c0_120 = arith.constant 0 : index
    %c0_121 = arith.constant 0 : index
    %133 = vector.load %arg9[%c0_119, %c0_120, %c0_121] : memref<1x104x6xbf16, #tpu.memory_space<vmem>>, vector<1x104x6xbf16>
    %134 = vector.shape_cast %133 : vector<1x104x6xbf16> to vector<104x6xbf16>
    %135 = vector.shape_cast %132 : vector<104x6xbf16> to vector<1x104x6xbf16>
    tpu.vector_store %arg9[%c0_119, %c0_120, %c0_121], %135 {strides = array<i32>} : memref<1x104x6xbf16, #tpu.memory_space<vmem>>, vector<1x104x6xbf16>,
    return
  }
  func.func @transform_0(%arg0: i32) -> (i32, i32, i32) {
    %c0_i32 = arith.constant 0 : i32
    %c0_i32_0 = arith.constant 0 : i32
    %c0_i32_1 = arith.constant 0 : i32
    return %arg0, %c0_i32, %c0_i32_0 : i32, i32, i32
  }
  func.func @transform_1(%arg0: i32) -> (i32, i32, i32) {
    %c0_i32 = arith.constant 0 : i32
    %c0_i32_0 = arith.constant 0 : i32
    %c0_i32_1 = arith.constant 0 : i32
    %c0_i32_2 = arith.constant 0 : i32
    return %c0_i32, %c0_i32_0, %c0_i32_1 : i32, i32, i32
  }
  func.func @transform_2(%arg0: i32) -> (i32, i32) {
    %c0_i32 = arith.constant 0 : i32
    %c0_i32_0 = arith.constant 0 : i32
    %c0_i32_1 = arith.constant 0 : i32
    return %c0_i32, %c0_i32_0 : i32, i32
  }
  func.func @transform_3(%arg0: i32) -> (i32, i32, i32) {
    %c0_i32 = arith.constant 0 : i32
    %c0_i32_0 = arith.constant 0 : i32
    %c0_i32_1 = arith.constant 0 : i32
    %c0_i32_2 = arith.constant 0 : i32
    return %c0_i32, %c0_i32_0, %c0_i32_1 : i32, i32, i32
  }
  func.func @transform_4(%arg0: i32) -> (i32, i32) {
    %c0_i32 = arith.constant 0 : i32
    %c0_i32_0 = arith.constant 0 : i32
    %c0_i32_1 = arith.constant 0 : i32
    return %c0_i32, %c0_i32_0 : i32, i32
  }
  func.func @transform_5(%arg0: i32) -> (i32, i32) {
    %c0_i32 = arith.constant 0 : i32
    %c0_i32_0 = arith.constant 0 : i32
    %c0_i32_1 = arith.constant 0 : i32
    return %c0_i32, %c0_i32_0 : i32, i32
  }
  func.func @transform_6(%arg0: i32) -> (i32, i32) {
    %c0_i32 = arith.constant 0 : i32
    %c0_i32_0 = arith.constant 0 : i32
    %c0_i32_1 = arith.constant 0 : i32
    return %c0_i32, %c0_i32_0 : i32, i32
  }
  func.func @transform_7(%arg0: i32) -> (i32, i32) {
    %c0_i32 = arith.constant 0 : i32
    %c0_i32_0 = arith.constant 0 : i32
    %c0_i32_1 = arith.constant 0 : i32
    return %c0_i32, %c0_i32_0 : i32, i32
  }
  func.func @transform_8(%arg0: i32) -> (i32, i32, i32) {
    %c0_i32 = arith.constant 0 : i32
    %c0_i32_0 = arith.constant 0 : i32
    %c0_i32_1 = arith.constant 0 : i32
    return %arg0, %c0_i32, %c0_i32_0 : i32, i32, i32
  }
}

</mosaic_0001>

<llo_original>
// kernel: tpu_custom_call.1
$region0: #{tpu_custom_call.1}
  #allocation0 [shape = 'u32[]', space=smem, size = 0x4, offset = 0x4, fixed_abs, tag = 'smem constant byte address 0x4 - core index']
  #allocation1 [shape = 'u32[72,128]{1,0:T(1,128)}', space=vmem, size = 0x9000, scoped, tag = 'internal scratch']
  %s0 = inlined_call_operand.vmem [shape: bf16[2,169,5], index: 0, kind: input, shape index: {}]
  %s1 = inlined_call_operand.vmem [shape: bf16[9,5,12], index: 1, kind: input, shape index: {}]
  %s2 = inlined_call_operand.vmem [shape: f32[1,12], index: 2, kind: input, shape index: {}]
  %s3 = inlined_call_operand.vmem [shape: bf16[9,5,6], index: 3, kind: input, shape index: {}]
  %s4 = inlined_call_operand.vmem [shape: f32[1,6], index: 4, kind: input, shape index: {}]
  %s5 = inlined_call_operand.vmem [shape: bf16[12,6], index: 5, kind: input, shape index: {}]
  %s6 = inlined_call_operand.vmem [shape: bf16[6,6], index: 6, kind: input, shape index: {}]
  %s7 = inlined_call_operand.vmem [shape: f32[1,6], index: 7, kind: input, shape index: {}]
  %s8 = inlined_call_operand.vmem [shape: bf16[2,104,6], index: 8, kind: output, shape index: {}]
  %s9 = sld [smem:[#allocation0]]
  $region65: #{tpu_custom_call.1} parent=0
    _
  %s11 = ssub.s32 1, %s9
  %s12 = scalar_select 0, %s11, %s9
  loop: start=0, step=1, limit=4
  $region2: #{tpu_custom_call.1} parent=0 // loop_pre_header
    _
  $region3: #{tpu_custom_call.1} parent=0 // loop_header
    %s14 = sphi 0, %s18
    %p15 = scmp.ge.s32.totalorder %s14, 4
    %s24 = sphi 0, %s26
    %s27 = sphi 0, %s24
    %s28 = sphi 0, %s27
    %s44 = sphi 0, %s28
    %s48 = sphi 0, %s48
    %s50 = sphi 0, %s48
    %s51 = sphi 0, %s50
    %s65 = sphi 0, %s51
    %s69 = sphi 0, %s69
    %s71 = sphi 0, %s69
    %s72 = sphi 0, %s71
    %s86 = sphi 0, %s72
    %s90 = sphi 0, %s90
    %s92 = sphi 0, %s90
    %s93 = sphi 0, %s92
    %s107 = sphi 0, %s93
    %s111 = sphi 0, %s111
    %s113 = sphi 0, %s111
    %s114 = sphi 0, %s113
    %s128 = sphi 0, %s114
    %s132 = sphi 0, %s132
    %s134 = sphi 0, %s132
    %s135 = sphi 0, %s134
    %s149 = sphi 0, %s135
    %s153 = sphi 0, %s153
    %s155 = sphi 0, %s153
    %s156 = sphi 0, %s155
    %s170 = sphi 0, %s156
    %s174 = sphi 0, %s174
    %s176 = sphi 0, %s174
    %s177 = sphi 0, %s176
    %s191 = sphi 0, %s177
    %s197 = sphi 0, %s199
    %s200 = sphi 0, %s197
    %s201 = sphi 0, %s200
    %s217 = sphi 0, %s201
  $region4: #{tpu_custom_call.1} parent=0 // loop_header_branch
    %17 = sbr.rel (%p15) target = $region8
  $region5: #{tpu_custom_call.1} parent=0 // loop_body
    %s19 = ssub.s32 %s14, 1
    %s20 = ssub.s32 %s14, 2
    %s21 = sadd.s32 %s14, 1
    %s22 = ssub.s32 %s14, %s21
    %p23 = scmp.eq.s32.totalorder %s22, 0
    %s25 = sadd.s32 %s24, 1
    %s26 = scalar_select %p23, %s24, %s25
    %p29 = pneg %p23
    %p30 = scmp.eq.s32.totalorder %s14, 1
    %p31 = por %p29, %p30
    %p32 = scmp.ne.s32.totalorder %s24, %s27
    %p33 = scmp.eq.s32.totalorder %s14, 0
    %p34 = por %p32, %p33
    %p35 = scmp.ne.s32.totalorder %s24, %s27
    %p36 = scmp.eq.s32.totalorder %s19, 1
    %p37 = por %p35, %p36
    %p38 = scmp.ne.s32.totalorder %s27, %s28
    %p39 = scmp.eq.s32.totalorder %s19, 0
    %p40 = por %p38, %p39
    %p41 = scmp.ne.s32.totalorder %s27, %s28
    %p42 = scmp.eq.s32.totalorder %s20, 1
    %p43 = por %p41, %p42
    %p45 = scmp.ne.s32.totalorder %s28, %s44
    %p46 = scmp.eq.s32.totalorder %s20, 0
    %p47 = por %p45, %p46
    %s49 = sadd.s32 %s48, 1
    %p52 = scmp.eq.s32.totalorder %s14, 1
    %p53 = scmp.ne.s32.totalorder %s48, %s50
    %p54 = scmp.eq.s32.totalorder %s14, 0
    %p55 = por %p53, %p54
    %p56 = scmp.ne.s32.totalorder %s48, %s50
    %p57 = scmp.eq.s32.totalorder %s19, 1
    %p58 = por %p56, %p57
    %p59 = scmp.ne.s32.totalorder %s50, %s51
    %p60 = scmp.eq.s32.totalorder %s19, 0
    %p61 = por %p59, %p60
    %p62 = scmp.ne.s32.totalorder %s50, %s51
    %p63 = scmp.eq.s32.totalorder %s20, 1
    %p64 = por %p62, %p63
    %p66 = scmp.ne.s32.totalorder %s51, %s65
    %p67 = scmp.eq.s32.totalorder %s20, 0
    %p68 = por %p66, %p67
    %s70 = sadd.s32 %s69, 1
    %p73 = scmp.eq.s32.totalorder %s14, 1
    %p74 = scmp.ne.s32.totalorder %s69, %s71
    %p75 = scmp.eq.s32.totalorder %s14, 0
    %p76 = por %p74, %p75
    %p77 = scmp.ne.s32.totalorder %s69, %s71
    %p78 = scmp.eq.s32.totalorder %s19, 1
    %p79 = por %p77, %p78
    %p80 = scmp.ne.s32.totalorder %s71, %s72
    %p81 = scmp.eq.s32.totalorder %s19, 0
    %p82 = por %p80, %p81
    %p83 = scmp.ne.s32.totalorder %s71, %s72
    %p84 = scmp.eq.s32.totalorder %s20, 1
    %p85 = por %p83, %p84
    %p87 = scmp.ne.s32.totalorder %s72, %s86
    %p88 = scmp.eq.s32.totalorder %s20, 0
    %p89 = por %p87, %p88
    %s91 = sadd.s32 %s90, 1
    %p94 = scmp.eq.s32.totalorder %s14, 1
    %p95 = scmp.ne.s32.totalorder %s90, %s92
    %p96 = scmp.eq.s32.totalorder %s14, 0
    %p97 = por %p95, %p96
    %p98 = scmp.ne.s32.totalorder %s90, %s92
    %p99 = scmp.eq.s32.totalorder %s19, 1
    %p100 = por %p98, %p99
    %p101 = scmp.ne.s32.totalorder %s92, %s93
    %p102 = scmp.eq.s32.totalorder %s19, 0
    %p103 = por %p101, %p102
    %p104 = scmp.ne.s32.totalorder %s92, %s93
    %p105 = scmp.eq.s32.totalorder %s20, 1
    %p106 = por %p104, %p105
    %p108 = scmp.ne.s32.totalorder %s93, %s107
    %p109 = scmp.eq.s32.totalorder %s20, 0
    %p110 = por %p108, %p109
    %s112 = sadd.s32 %s111, 1
    %p115 = scmp.eq.s32.totalorder %s14, 1
    %p116 = scmp.ne.s32.totalorder %s111, %s113
    %p117 = scmp.eq.s32.totalorder %s14, 0
    %p118 = por %p116, %p117
    %p119 = scmp.ne.s32.totalorder %s111, %s113
    %p120 = scmp.eq.s32.totalorder %s19, 1
    %p121 = por %p119, %p120
    %p122 = scmp.ne.s32.totalorder %s113, %s114
    %p123 = scmp.eq.s32.totalorder %s19, 0
    %p124 = por %p122, %p123
    %p125 = scmp.ne.s32.totalorder %s113, %s114
    %p126 = scmp.eq.s32.totalorder %s20, 1
    %p127 = por %p125, %p126
    %p129 = scmp.ne.s32.totalorder %s114, %s128
    %p130 = scmp.eq.s32.totalorder %s20, 0
    %p131 = por %p129, %p130
    %s133 = sadd.s32 %s132, 1
    %p136 = scmp.eq.s32.totalorder %s14, 1
    %p137 = scmp.ne.s32.totalorder %s132, %s134
    %p138 = scmp.eq.s32.totalorder %s14, 0
    %p139 = por %p137, %p138
    %p140 = scmp.ne.s32.totalorder %s132, %s134
    %p141 = scmp.eq.s32.totalorder %s19, 1
    %p142 = por %p140, %p141
    %p143 = scmp.ne.s32.totalorder %s134, %s135
    %p144 = scmp.eq.s32.totalorder %s19, 0
    %p145 = por %p143, %p144
    %p146 = scmp.ne.s32.totalorder %s134, %s135
    %p147 = scmp.eq.s32.totalorder %s20, 1
    %p148 = por %p146, %p147
    %p150 = scmp.ne.s32.totalorder %s135, %s149
    %p151 = scmp.eq.s32.totalorder %s20, 0
    %p152 = por %p150, %p151
    %s154 = sadd.s32 %s153, 1
    %p157 = scmp.eq.s32.totalorder %s14, 1
    %p158 = scmp.ne.s32.totalorder %s153, %s155
    %p159 = scmp.eq.s32.totalorder %s14, 0
    %p160 = por %p158, %p159
    %p161 = scmp.ne.s32.totalorder %s153, %s155
    %p162 = scmp.eq.s32.totalorder %s19, 1
    %p163 = por %p161, %p162
    %p164 = scmp.ne.s32.totalorder %s155, %s156
    %p165 = scmp.eq.s32.totalorder %s19, 0
    %p166 = por %p164, %p165
    %p167 = scmp.ne.s32.totalorder %s155, %s156
    %p168 = scmp.eq.s32.totalorder %s20, 1
    %p169 = por %p167, %p168
    %p171 = scmp.ne.s32.totalorder %s156, %s170
    %p172 = scmp.eq.s32.totalorder %s20, 0
    %p173 = por %p171, %p172
    %s175 = sadd.s32 %s174, 1
    %p178 = scmp.eq.s32.totalorder %s14, 1
    %p179 = scmp.ne.s32.totalorder %s174, %s176
    %p180 = scmp.eq.s32.totalorder %s14, 0
    %p181 = por %p179, %p180
    %p182 = scmp.ne.s32.totalorder %s174, %s176
    %p183 = scmp.eq.s32.totalorder %s19, 1
    %p184 = por %p182, %p183
    %p185 = scmp.ne.s32.totalorder %s176, %s177
    %p186 = scmp.eq.s32.totalorder %s19, 0
    %p187 = por %p185, %p186
    %p188 = scmp.ne.s32.totalorder %s176, %s177
    %p189 = scmp.eq.s32.totalorder %s20, 1
    %p190 = por %p188, %p189
    %p192 = scmp.ne.s32.totalorder %s177, %s191
    %p193 = scmp.eq.s32.totalorder %s20, 0
    %p194 = por %p192, %p193
    %s195 = ssub.s32 %s14, %s21
    %p196 = scmp.eq.s32.totalorder %s195, 0
    %s198 = sadd.s32 %s197, 1
    %s199 = scalar_select %p196, %s197, %s198
    %p202 = pneg %p196
    %p203 = scmp.eq.s32.totalorder %s14, 1
    %p204 = por %p202, %p203
    %p205 = scmp.ne.s32.totalorder %s197, %s200
    %p206 = scmp.eq.s32.totalorder %s14, 0
    %p207 = por %p205, %p206
    %p208 = scmp.ne.s32.totalorder %s197, %s200
    %p209 = scmp.eq.s32.totalorder %s19, 1
    %p210 = por %p208, %p209
    %p211 = scmp.ne.s32.totalorder %s200, %s201
    %p212 = scmp.eq.s32.totalorder %s19, 0
    %p213 = por %p211, %p212
    %p214 = scmp.ne.s32.totalorder %s200, %s201
    %p215 = scmp.eq.s32.totalorder %s20, 1
    %p216 = por %p214, %p215
    %p218 = scmp.ne.s32.totalorder %s201, %s217
    %p219 = scmp.eq.s32.totalorder %s20, 0
    %p220 = por %p218, %p219
    %p221 = scmp.le.s32.totalorder 1, %s14
    %p222 = scmp.lt.s32.totalorder %s14, 3
    %p223 = pnand %p221, %p222
    %p224 = pneg %p223
    // Predicated region
    $region9: #{tpu_custom_call.1} parent=5 // pred_check
      _
    $region10: #{tpu_custom_call.1} parent=5 // pred_check_branch
      %226 = sbr.rel (%p223) target = $region12
    $region11: #{tpu_custom_call.1} parent=5 // pred_region
      %s227 = ssub.s32 %s14, 1
      // Predicated region
      $region13: #{tpu_custom_call.1} parent=11 // pred_check
        %p228 = pneg %p61
      $region14: #{tpu_custom_call.1} parent=11 // pred_check_branch
        %230 = sbr.rel (%p228) target = $region16
      $region15: #{tpu_custom_call.1} parent=11 // pred_region
        _
      $region16: #{tpu_custom_call.1} parent=11 // pred_fallthru
        _
      // Predicated region
      $region17: #{tpu_custom_call.1} parent=11 // pred_check
        %p231 = pneg %p82
      $region18: #{tpu_custom_call.1} parent=11 // pred_check_branch
        %233 = sbr.rel (%p231) target = $region20
      $region19: #{tpu_custom_call.1} parent=11 // pred_region
        _
      $region20: #{tpu_custom_call.1} parent=11 // pred_fallthru
        _
      // Predicated region
      $region21: #{tpu_custom_call.1} parent=11 // pred_check
        %p234 = pneg %p103
      $region22: #{tpu_custom_call.1} parent=11 // pred_check_branch
        %236 = sbr.rel (%p234) target = $region24
      $region23: #{tpu_custom_call.1} parent=11 // pred_region
        _
      $region24: #{tpu_custom_call.1} parent=11 // pred_fallthru
        _
      // Predicated region
      $region25: #{tpu_custom_call.1} parent=11 // pred_check
        %p237 = pneg %p124
      $region26: #{tpu_custom_call.1} parent=11 // pred_check_branch
        %239 = sbr.rel (%p237) target = $region28
      $region27: #{tpu_custom_call.1} parent=11 // pred_region
        _
      $region28: #{tpu_custom_call.1} parent=11 // pred_fallthru
        _
      // Predicated region
      $region29: #{tpu_custom_call.1} parent=11 // pred_check
        %p240 = pneg %p145
      $region30: #{tpu_custom_call.1} parent=11 // pred_check_branch
        %242 = sbr.rel (%p240) target = $region32
      $region31: #{tpu_custom_call.1} parent=11 // pred_region
        _
      $region32: #{tpu_custom_call.1} parent=11 // pred_fallthru
        _
      // Predicated region
      $region33: #{tpu_custom_call.1} parent=11 // pred_check
        %p243 = pneg %p166
      $region34: #{tpu_custom_call.1} parent=11 // pred_check_branch
        %245 = sbr.rel (%p243) target = $region36
      $region35: #{tpu_custom_call.1} parent=11 // pred_region
        _
      $region36: #{tpu_custom_call.1} parent=11 // pred_fallthru
        _
      // Predicated region
      $region37: #{tpu_custom_call.1} parent=11 // pred_check
        %p246 = pneg %p187
      $region38: #{tpu_custom_call.1} parent=11 // pred_check_branch
        %248 = sbr.rel (%p246) target = $region40
      $region39: #{tpu_custom_call.1} parent=11 // pred_region
        _
      $region40: #{tpu_custom_call.1} parent=11 // pred_fallthru
        _
    $region12: #{tpu_custom_call.1} parent=5 // pred_fallthru
      _
    %p249 = scmp.lt.s32.totalorder %s14, 2
    // Predicated region
    $region41: #{tpu_custom_call.1} parent=5 // pred_check
      %p250 = pneg %p249
    $region42: #{tpu_custom_call.1} parent=5 // pred_check_branch
      %252 = sbr.rel (%p250) target = $region44
    $region43: #{tpu_custom_call.1} parent=5 // pred_region
      // Predicated region
      $region45: #{tpu_custom_call.1} parent=43 // pred_check
        %p253 = pneg %p34
      $region46: #{tpu_custom_call.1} parent=43 // pred_check_branch
        %255 = sbr.rel (%p253) target = $region48
      $region47: #{tpu_custom_call.1} parent=43 // pred_region
        %p256 = scmp.lt.s32.totalorder %s14, 1
        %s257 = scalar_select %p256, %s14, 1
        %s258 = smul.addr %s257, 22
        %s259 = smul.addr %s258, 4
        %s260 = scalar_lea.vmem %s0, %s259
      $region48: #{tpu_custom_call.1} parent=43 // pred_fallthru
        _
    $region44: #{tpu_custom_call.1} parent=5 // pred_fallthru
      _
    %p261 = scmp.le.s32.totalorder 1, %s14
    %p262 = scmp.lt.s32.totalorder %s14, 3
    %p263 = pnand %p261, %p262
    %p264 = pneg %p263
    // Predicated region
    $region49: #{tpu_custom_call.1} parent=5 // pred_check
      _
    $region50: #{tpu_custom_call.1} parent=5 // pred_check_branch
      %266 = sbr.rel (%p263) target = $region52
    $region51: #{tpu_custom_call.1} parent=5 // pred_region
      %s267 = ssub.s32 %s14, 1
      %p268 = scmp.lt.s32.totalorder %s19, 1
      %s269 = scalar_select %p268, %s19, 1
      %s270 = smul.addr %s269, 22
      %s271 = smul.addr %s270, 4
      %s272 = scalar_lea.vmem %s0, %s271
      %p273 = pneg %p40
      %p274 = pneg %p37
      %p275 = pneg %p61
      %p276 = pneg %p58
      %p277 = pneg %p82
      %p278 = pneg %p79
      %p279 = pneg %p103
      %p280 = pneg %p100
      %p281 = pneg %p124
      %p282 = pneg %p121
      %p283 = pneg %p145
      %p284 = pneg %p142
      %p285 = pneg %p166
      %p286 = pneg %p163
      %p287 = pneg %p187
      %p288 = pneg %p184
      %p289 = pneg %p213
      %p290 = pneg %p210
      %p291 = scmp.lt.s32.totalorder %s19, 1
      %s292 = scalar_select %p291, %s19, 1
      %s293 = smul.addr %s292, 13
      %s294 = smul.addr %s293, 4
      %s295 = scalar_lea.vmem %s8, %s294
      %p296 = scmp.lt.s32.totalorder %s19, 1
      %s297 = scalar_select %p296, %s19, 1
      %s298 = smul.addr %s297, 22
      %s299 = smul.addr %s298, 4
      %s300 = scalar_lea.vmem %s0, %s299
      %p301 = scmp.lt.s32.totalorder %s19, 1
      %s302 = scalar_select %p301, %s19, 1
      %s303 = smul.addr %s302, 13
      %s304 = smul.addr %s303, 4
      %s305 = scalar_lea.vmem %s8, %s304
      %v307 = vld [vmem:[%s300 + $0x4] sm:$0x8]
      %v308 = vld [vmem:[%s300 + $0x8] sm:$0xf]
      %v309 = vld [vmem:[%s300 + $0xc] sm:$0xf]
      %v310 = vld [vmem:[%s300 + $0x10] sm:$0xf]
      %v311 = vld [vmem:[%s300 + $0x14] sm:$0xf]
      %v312 = vld [vmem:[%s300 + $0x18] sm:$0xf]
      %v313 = vld [vmem:[%s300 + $0x1c] sm:$0xf]
      %v314 = vld [vmem:[%s300 + $0x20] sm:$0xf]
      %v315 = vld [vmem:[%s300 + $0x24] sm:$0xf]
      %v316 = vld [vmem:[%s300 + $0x28] sm:$0xf]
      %v317 = vld [vmem:[%s300 + $0x2c] sm:$0xf]
      %v318 = vld [vmem:[%s300 + $0x30] sm:$0xf]
      %v319 = vld [vmem:[%s300 + $0x34] sm:$0xf]
      %v320 = vld [vmem:[%s300 + $0x38] sm:$0x7]
      %v321 = vld [vmem:[%s1] sm:$0x7]
      %v322 = vld [vmem:[%s300] sm:$0xf]
      %v323 = vld [vmem:[%s300 + $0x4] sm:$0xf]
      %v324 = vld [vmem:[%s3] sm:$0x7]
      %v325 = vld [vmem:[%s300 + $0x38] sm:$0xf]
      %s326 = scalar_lea.vmem %s1, 4
      %v327 = vld [vmem:[%s326] sm:$0x7]
      %v342 = vunpack.c.l.b16 %v307
      %v343 = vunpack.c.l.b16 %v308
      %v344 = vunpack.c.l.b16 %v309
      %v345 = vunpack.c.l.b16 %v310
      %v346 = vunpack.c.l.b16 %v311
      %v347 = vunpack.c.l.b16 %v312
      %v348 = vunpack.c.l.b16 %v313
      %v349 = vunpack.c.l.b16 %v314
      %v350 = vunpack.c.l.b16 %v315
      %v351 = vunpack.c.l.b16 %v316
      %v352 = vunpack.c.l.b16 %v317
      %v353 = vunpack.c.l.b16 %v318
      %v354 = vunpack.c.l.b16 %v319
      %v355 = vunpack.c.l.b16 %v325
      %v356 = vpack.c.b16 %v343, %v342
      %v357 = vpack.c.b16 %v345, %v344
      %v358 = vpack.c.b16 %v347, %v346
      %v359 = vpack.c.b16 %v349, %v348
      %v360 = vpack.c.b16 %v351, %v350
      %v361 = vpack.c.b16 %v353, %v352
      %v362 = vpack.c.b16 %v355, %v354
      %vm363 = vsmask.f32 4352
      %v365 = vshrl.u32 %v356, 16
      %v367 = vrot.slane %v365, 3
      %v368 = vshll.u32 %v356, 16
      %v370 = vrot.slane %v368, 4
      %v371 = vor.u32 %v367, %v370
      %v373 = vshrl.u32 %v357, 16
      %v375 = vrot.slane %v373, 3
      %v376 = vshll.u32 %v357, 16
      %v378 = vrot.slane %v376, 4
      %v379 = vor.u32 %v375, %v378
      %v380 = vsel %vm363, %v371, %v379
      %v382 = vshrl.u32 %v358, 16
      %v384 = vrot.slane %v382, 3
      %v385 = vshll.u32 %v358, 16
      %v387 = vrot.slane %v385, 4
      %v388 = vor.u32 %v384, %v387
      %v389 = vsel %vm363, %v379, %v388
      %v391 = vshrl.u32 %v359, 16
      %v393 = vrot.slane %v391, 3
      %v394 = vshll.u32 %v359, 16
      %v396 = vrot.slane %v394, 4
      %v397 = vor.u32 %v393, %v396
      %v398 = vsel %vm363, %v388, %v397
      %v400 = vshrl.u32 %v360, 16
      %v402 = vrot.slane %v400, 3
      %v403 = vshll.u32 %v360, 16
      %v405 = vrot.slane %v403, 4
      %v406 = vor.u32 %v402, %v405
      %v407 = vsel %vm363, %v397, %v406
      %v409 = vshrl.u32 %v361, 16
      %v411 = vrot.slane %v409, 3
      %v412 = vshll.u32 %v361, 16
      %v414 = vrot.slane %v412, 4
      %v415 = vor.u32 %v411, %v414
      %v416 = vsel %vm363, %v406, %v415
      %v418 = vshrl.u32 %v362, 16
      %v420 = vrot.slane %v418, 3
      %v421 = vshll.u32 %v362, 16
      %v423 = vrot.slane %v421, 4
      %v424 = vor.u32 %v420, %v423
      %v425 = vsel %vm363, %v415, %v424
      %vm426 = vcmask 39936
      %v428 = vsel %vm426, %v380, 0
      %v431 = vsel %vm426, %v389, 0
      %v434 = vsel %vm426, %v398, 0
      %v437 = vsel %vm426, %v407, 0
      %v440 = vsel %vm426, %v416, 0
      %v443 = vsel %vm426, %v425, 0
      %v446 = vsel %vm426, %v424, 0
      %vm448 = vcmask 1041408
      %vm449 = vcmask 1042432
      %v450 = vsel %vm448, 4294967295, 65535
      %v451 = vsel %vm449, %v450, 0
      %v453 = vand.u32 %v327, %v451
      %455 = vmatpush.bf16.msra.mxu0 0
      %456 = vmatpush.bf16.msra.mxu0 0
      %457 = vmatpush.bf16.msra.mxu0 0
      %458 = vmatpush.bf16.msra.mxu0 0
      %459 = vmatpush.bf16.msra.mxu0 0
      %460 = vmatpush.bf16.msra.mxu0 0
      %461 = vmatpush.bf16.msra.mxu0 0
      %462 = vmatpush.bf16.msra.mxu0 %v453
      %463 = vmatmul.bf16.gmra.mxu0 %v428
      %v464 = vpop.f32.mrf.mxu0
      %v465 = vadd.f32 0.0, %v464
      %v466 = vpop.f32.mrf.mxu0
      %v467 = vadd.f32 0.0, %v466
      %468 = vmatmul.bf16.gmra.mxu0 %v431
      %v469 = vpop.f32.mrf.mxu0
      %v470 = vadd.f32 0.0, %v469
      %v471 = vpop.f32.mrf.mxu0
      %v472 = vadd.f32 0.0, %v471
      %473 = vmatmul.bf16.gmra.mxu0 %v434
      %v474 = vpop.f32.mrf.mxu0
      %v475 = vadd.f32 0.0, %v474
      %v476 = vpop.f32.mrf.mxu0
      %v477 = vadd.f32 0.0, %v476
      %478 = vmatmul.bf16.gmra.mxu0 %v437
      %v479 = vpop.f32.mrf.mxu0
      %v480 = vadd.f32 0.0, %v479
      %v481 = vpop.f32.mrf.mxu0
      %v482 = vadd.f32 0.0, %v481
      %483 = vmatmul.bf16.gmra.mxu0 %v440
      %v484 = vpop.f32.mrf.mxu0
      %v485 = vadd.f32 0.0, %v484
      %v486 = vpop.f32.mrf.mxu0
      %v487 = vadd.f32 0.0, %v486
      %488 = vmatmul.bf16.gmra.mxu0 %v443
      %v489 = vpop.f32.mrf.mxu0
      %v490 = vadd.f32 0.0, %v489
      %v491 = vpop.f32.mrf.mxu0
      %v492 = vadd.f32 0.0, %v491
      %493 = vmatmul.bf16.gmra.mxu0 %v446
      %v494 = vpop.f32.mrf.mxu0
      %v495 = vadd.f32 0.0, %v494
      %v496 = vpop.f32.mrf.mxu0
      %497 = vdwg.mxu0
      %v499 = vunpack.c.l.b16 %v320
      %v500 = vpack.c.b16 %v499, %v354
      %vm501 = vcmask 1044480
      %v502 = vrot.slane %v356, 3
      %v503 = vrot.slane %v357, 3
      %v504 = vsel %vm501, %v502, %v503
      %v505 = vrot.slane %v358, 3
      %v506 = vsel %vm501, %v503, %v505
      %v507 = vrot.slane %v359, 3
      %v508 = vsel %vm501, %v505, %v507
      %v509 = vrot.slane %v360, 3
      %v510 = vsel %vm501, %v507, %v509
      %v511 = vrot.slane %v361, 3
      %v512 = vsel %vm501, %v509, %v511
      %v513 = vrot.slane %v500, 3
      %v514 = vsel %vm501, %v511, %v513
      %v516 = vsel %vm426, %v504, 0
      %v519 = vsel %vm426, %v506, 0
      %v522 = vsel %vm426, %v508, 0
      %v525 = vsel %vm426, %v510, 0
      %v528 = vsel %vm426, %v512, 0
      %v531 = vsel %vm426, %v514, 0
      %v534 = vsel %vm426, %v513, 0
      %v537 = vand.u32 %v321, %v451
      %539 = vmatpush.bf16.msra.mxu0 0
      %540 = vmatpush.bf16.msra.mxu0 0
      %541 = vmatpush.bf16.msra.mxu0 0
      %542 = vmatpush.bf16.msra.mxu0 0
      %543 = vmatpush.bf16.msra.mxu0 0
      %544 = vmatpush.bf16.msra.mxu0 0
      %545 = vmatpush.bf16.msra.mxu0 0
      %546 = vmatpush.bf16.msra.mxu0 %v537
      %547 = vmatmul.bf16.gmra.mxu0 %v516
      %v548 = vpop.f32.mrf.mxu0
      %v549 = vadd.f32 %v465, %v548
      %v550 = vpop.f32.mrf.mxu0
      %v551 = vadd.f32 %v467, %v550
      %552 = vmatmul.bf16.gmra.mxu0 %v519
      %v553 = vpop.f32.mrf.mxu0
      %v554 = vadd.f32 %v470, %v553
      %v555 = vpop.f32.mrf.mxu0
      %v556 = vadd.f32 %v472, %v555
      %557 = vmatmul.bf16.gmra.mxu0 %v522
      %v558 = vpop.f32.mrf.mxu0
      %v559 = vadd.f32 %v475, %v558
      %v560 = vpop.f32.mrf.mxu0
      %v561 = vadd.f32 %v477, %v560
      %562 = vmatmul.bf16.gmra.mxu0 %v525
      %v563 = vpop.f32.mrf.mxu0
      %v564 = vadd.f32 %v480, %v563
      %v565 = vpop.f32.mrf.mxu0
      %v566 = vadd.f32 %v482, %v565
      %567 = vmatmul.bf16.gmra.mxu0 %v528
      %v568 = vpop.f32.mrf.mxu0
      %v569 = vadd.f32 %v485, %v568
      %v570 = vpop.f32.mrf.mxu0
      %v571 = vadd.f32 %v487, %v570
      %572 = vmatmul.bf16.gmra.mxu0 %v531
      %v573 = vpop.f32.mrf.mxu0
      %v574 = vadd.f32 %v490, %v573
      %v575 = vpop.f32.mrf.mxu0
      %v576 = vadd.f32 %v492, %v575
      %577 = vmatmul.bf16.gmra.mxu0 %v534
      %v578 = vpop.f32.mrf.mxu0
      %v579 = vadd.f32 %v495, %v578
      %v580 = vpop.f32.mrf.mxu0
      %581 = vdwg.mxu0
      %v582 = vld [vmem:[%s300] sm:$0xe]
      %v583 = vld [vmem:[%s300 + $0x4] sm:$0xf]
      %v584 = vld [vmem:[%s300 + $0x8] sm:$0xf]
      %v585 = vld [vmem:[%s300 + $0xc] sm:$0xf]
      %v586 = vld [vmem:[%s300 + $0x10] sm:$0xf]
      %v587 = vld [vmem:[%s300 + $0x14] sm:$0xf]
      %v588 = vld [vmem:[%s300 + $0x18] sm:$0xf]
      %v589 = vld [vmem:[%s300 + $0x1c] sm:$0xf]
      %v590 = vld [vmem:[%s300 + $0x20] sm:$0xf]
      %v591 = vld [vmem:[%s300 + $0x24] sm:$0xf]
      %v592 = vld [vmem:[%s300 + $0x28] sm:$0xf]
      %v593 = vld [vmem:[%s300 + $0x2c] sm:$0xf]
      %v594 = vld [vmem:[%s300 + $0x30] sm:$0xf]
      %v595 = vld [vmem:[%s300 + $0x34] sm:$0x1]
      %s596 = scalar_lea.vmem %s3, 4
      %v597 = vld [vmem:[%s596] sm:$0x7]
      %v612 = vunpack.c.l.b16 %v582
      %v613 = vunpack.c.l.b16 %v583
      %v614 = vunpack.c.l.b16 %v584
      %v615 = vunpack.c.l.b16 %v585
      %v616 = vunpack.c.l.b16 %v586
      %v617 = vunpack.c.l.b16 %v587
      %v618 = vunpack.c.l.b16 %v588
      %v619 = vunpack.c.l.b16 %v589
      %v620 = vunpack.c.l.b16 %v590
      %v621 = vunpack.c.l.b16 %v591
      %v622 = vunpack.c.l.b16 %v592
      %v623 = vunpack.c.l.b16 %v593
      %v624 = vunpack.c.l.b16 %v594
      %v625 = vunpack.c.l.b16 %v595
      %v626 = vpack.c.b16 %v613, %v612
      %v627 = vpack.c.b16 %v615, %v614
      %v628 = vpack.c.b16 %v617, %v616
      %v629 = vpack.c.b16 %v619, %v618
      %v630 = vpack.c.b16 %v621, %v620
      %v631 = vpack.c.b16 %v623, %v622
      %v632 = vpack.c.b16 %v625, %v624
      %vm633 = vcmask 1046528
      %v634 = vrot.slane %v626, 1
      %v635 = vrot.slane %v627, 1
      %v636 = vsel %vm633, %v634, %v635
      %v637 = vrot.slane %v628, 1
      %v638 = vsel %vm633, %v635, %v637
      %v639 = vrot.slane %v629, 1
      %v640 = vsel %vm633, %v637, %v639
      %v641 = vrot.slane %v630, 1
      %v642 = vsel %vm633, %v639, %v641
      %v643 = vrot.slane %v631, 1
      %v644 = vsel %vm633, %v641, %v643
      %v645 = vrot.slane %v632, 1
      %v646 = vsel %vm633, %v643, %v645
      %v648 = vsel %vm426, %v636, 0
      %v651 = vsel %vm426, %v638, 0
      %v654 = vsel %vm426, %v640, 0
      %v657 = vsel %vm426, %v642, 0
      %v660 = vsel %vm426, %v644, 0
      %v663 = vsel %vm426, %v646, 0
      %v666 = vsel %vm426, %v645, 0
      %v669 = vand.u32 %v597, %v451
      %671 = vmatpush.bf16.msra.mxu0 0
      %672 = vmatpush.bf16.msra.mxu0 0
      %673 = vmatpush.bf16.msra.mxu0 0
      %674 = vmatpush.bf16.msra.mxu0 0
      %675 = vmatpush.bf16.msra.mxu0 0
      %676 = vmatpush.bf16.msra.mxu0 0
      %677 = vmatpush.bf16.msra.mxu0 0
      %678 = vmatpush.bf16.msra.mxu0 %v669
      %679 = vmatmul.bf16.gmra.mxu0 %v648
      %v680 = vpop.f32.mrf.mxu0
      %v681 = vadd.f32 0.0, %v680
      %v682 = vpop.f32.mrf.mxu0
      %v683 = vadd.f32 0.0, %v682
      %684 = vmatmul.bf16.gmra.mxu0 %v651
      %v685 = vpop.f32.mrf.mxu0
      %v686 = vadd.f32 0.0, %v685
      %v687 = vpop.f32.mrf.mxu0
      %v688 = vadd.f32 0.0, %v687
      %689 = vmatmul.bf16.gmra.mxu0 %v654
      %v690 = vpop.f32.mrf.mxu0
      %v691 = vadd.f32 0.0, %v690
      %v692 = vpop.f32.mrf.mxu0
      %v693 = vadd.f32 0.0, %v692
      %694 = vmatmul.bf16.gmra.mxu0 %v657
      %v695 = vpop.f32.mrf.mxu0
      %v696 = vadd.f32 0.0, %v695
      %v697 = vpop.f32.mrf.mxu0
      %v698 = vadd.f32 0.0, %v697
      %699 = vmatmul.bf16.gmra.mxu0 %v660
      %v700 = vpop.f32.mrf.mxu0
      %v701 = vadd.f32 0.0, %v700
      %v702 = vpop.f32.mrf.mxu0
      %v703 = vadd.f32 0.0, %v702
      %704 = vmatmul.bf16.gmra.mxu0 %v663
      %v705 = vpop.f32.mrf.mxu0
      %v706 = vadd.f32 0.0, %v705
      %v707 = vpop.f32.mrf.mxu0
      %v708 = vadd.f32 0.0, %v707
      %709 = vmatmul.bf16.gmra.mxu0 %v666
      %v710 = vpop.f32.mrf.mxu0
      %v711 = vadd.f32 0.0, %v710
      %v712 = vpop.f32.mrf.mxu0
      %713 = vdwg.mxu0
      %v716 = vunpack.c.l.b16 %v322
      %v717 = vunpack.c.l.b16 %v323
      %v718 = vpack.c.b16 %v717, %v716
      %v719 = vpack.c.b16 %v344, %v343
      %v720 = vpack.c.b16 %v346, %v345
      %v721 = vpack.c.b16 %v348, %v347
      %v722 = vpack.c.b16 %v350, %v349
      %v723 = vpack.c.b16 %v352, %v351
      %v724 = vpack.c.b16 %v353, %v353
      %v726 = vsel %vm426, %v718, 0
      %v729 = vsel %vm426, %v719, 0
      %v732 = vsel %vm426, %v720, 0
      %v735 = vsel %vm426, %v721, 0
      %v738 = vsel %vm426, %v722, 0
      %v741 = vsel %vm426, %v723, 0
      %v744 = vsel %vm426, %v724, 0
      %v747 = vand.u32 %v324, %v451
      %749 = vmatpush.bf16.msra.mxu0 0
      %750 = vmatpush.bf16.msra.mxu0 0
      %751 = vmatpush.bf16.msra.mxu0 0
      %752 = vmatpush.bf16.msra.mxu0 0
      %753 = vmatpush.bf16.msra.mxu0 0
      %754 = vmatpush.bf16.msra.mxu0 0
      %755 = vmatpush.bf16.msra.mxu0 0
      %756 = vmatpush.bf16.msra.mxu0 %v747
      %757 = vmatmul.bf16.gmra.mxu0 %v726
      %v758 = vpop.f32.mrf.mxu0
      %v759 = vadd.f32 %v681, %v758
      %v760 = vpop.f32.mrf.mxu0
      %v761 = vadd.f32 %v683, %v760
      %762 = vmatmul.bf16.gmra.mxu0 %v729
      %v763 = vpop.f32.mrf.mxu0
      %v764 = vadd.f32 %v686, %v763
      %v765 = vpop.f32.mrf.mxu0
      %v766 = vadd.f32 %v688, %v765
      %767 = vmatmul.bf16.gmra.mxu0 %v732
      %v768 = vpop.f32.mrf.mxu0
      %v769 = vadd.f32 %v691, %v768
      %v770 = vpop.f32.mrf.mxu0
      %v771 = vadd.f32 %v693, %v770
      %772 = vmatmul.bf16.gmra.mxu0 %v735
      %v773 = vpop.f32.mrf.mxu0
      %v774 = vadd.f32 %v696, %v773
      %v775 = vpop.f32.mrf.mxu0
      %v776 = vadd.f32 %v698, %v775
      %777 = vmatmul.bf16.gmra.mxu0 %v738
      %v778 = vpop.f32.mrf.mxu0
      %v779 = vadd.f32 %v701, %v778
      %v780 = vpop.f32.mrf.mxu0
      %v781 = vadd.f32 %v703, %v780
      %782 = vmatmul.bf16.gmra.mxu0 %v741
      %v783 = vpop.f32.mrf.mxu0
      %v784 = vadd.f32 %v706, %v783
      %v785 = vpop.f32.mrf.mxu0
      %v786 = vadd.f32 %v708, %v785
      %787 = vmatmul.bf16.gmra.mxu0 %v744
      %v788 = vpop.f32.mrf.mxu0
      %v789 = vadd.f32 %v711, %v788
      %v790 = vpop.f32.mrf.mxu0
      %791 = vdwg.mxu0
      %s792 = scalar_lea.vmem %s1, 8
      %v793 = vld [vmem:[%s792] sm:$0x7]
      %v794 = vpack.c.b16 %v354, %v353
      %v795 = vpack.c.b16 %v355, %v355
      %v797 = vsel %vm426, %v794, 0
      %v800 = vsel %vm426, %v795, 0
      %v803 = vand.u32 %v793, %v451
      %805 = vmatpush.bf16.msra.mxu0 0
      %806 = vmatpush.bf16.msra.mxu0 0
      %807 = vmatpush.bf16.msra.mxu0 0
      %808 = vmatpush.bf16.msra.mxu0 0
      %809 = vmatpush.bf16.msra.mxu0 0
      %810 = vmatpush.bf16.msra.mxu0 0
      %811 = vmatpush.bf16.msra.mxu0 0
      %812 = vmatpush.bf16.msra.mxu0 %v803
      %813 = vmatmul.bf16.gmra.mxu0 %v729
      %v814 = vpop.f32.mrf.mxu0
      %v815 = vadd.f32 0.0, %v814
      %v816 = vpop.f32.mrf.mxu0
      %v817 = vadd.f32 0.0, %v816
      %818 = vmatmul.bf16.gmra.mxu0 %v732
      %v819 = vpop.f32.mrf.mxu0
      %v820 = vadd.f32 0.0, %v819
      %v821 = vpop.f32.mrf.mxu0
      %v822 = vadd.f32 0.0, %v821
      %823 = vmatmul.bf16.gmra.mxu0 %v735
      %v824 = vpop.f32.mrf.mxu0
      %v825 = vadd.f32 0.0, %v824
      %v826 = vpop.f32.mrf.mxu0
      %v827 = vadd.f32 0.0, %v826
      %828 = vmatmul.bf16.gmra.mxu0 %v738
      %v829 = vpop.f32.mrf.mxu0
      %v830 = vadd.f32 0.0, %v829
      %v831 = vpop.f32.mrf.mxu0
      %v832 = vadd.f32 0.0, %v831
      %833 = vmatmul.bf16.gmra.mxu0 %v741
      %v834 = vpop.f32.mrf.mxu0
      %v835 = vadd.f32 0.0, %v834
      %v836 = vpop.f32.mrf.mxu0
      %v837 = vadd.f32 0.0, %v836
      %838 = vmatmul.bf16.gmra.mxu0 %v797
      %v839 = vpop.f32.mrf.mxu0
      %v840 = vadd.f32 0.0, %v839
      %v841 = vpop.f32.mrf.mxu0
      %v842 = vadd.f32 0.0, %v841
      %843 = vmatmul.bf16.gmra.mxu0 %v800
      %v844 = vpop.f32.mrf.mxu0
      %v845 = vadd.f32 0.0, %v844
      %v846 = vpop.f32.mrf.mxu0
      %847 = vdwg.mxu0
      %v848 = vadd.f32 %v549, %v815
      %v849 = vadd.f32 %v551, %v817
      %v850 = vadd.f32 %v554, %v820
      %v851 = vadd.f32 %v556, %v822
      %v852 = vadd.f32 %v559, %v825
      %v853 = vadd.f32 %v561, %v827
      %v854 = vadd.f32 %v564, %v830
      %v855 = vadd.f32 %v566, %v832
      %v856 = vadd.f32 %v569, %v835
      %v857 = vadd.f32 %v571, %v837
      %v858 = vadd.f32 %v574, %v840
      %v859 = vadd.f32 %v576, %v842
      %v860 = vadd.f32 %v579, %v845
      %v861 = vld [vmem:[%s300] sm:$0xc]
      %v862 = vld [vmem:[%s300 + $0x34] sm:$0x3]
      %s863 = scalar_lea.vmem %s3, 8
      %v864 = vld [vmem:[%s863] sm:$0x7]
      %v867 = vunpack.c.l.b16 %v861
      %v868 = vunpack.c.l.b16 %v862
      %v869 = vpack.c.b16 %v613, %v867
      %v870 = vpack.c.b16 %v868, %v624
      %vm871 = vcmask 1045504
      %v872 = vrot.slane %v869, 2
      %v873 = vrot.slane %v627, 2
      %v874 = vsel %vm871, %v872, %v873
      %v875 = vrot.slane %v628, 2
      %v876 = vsel %vm871, %v873, %v875
      %v877 = vrot.slane %v629, 2
      %v878 = vsel %vm871, %v875, %v877
      %v879 = vrot.slane %v630, 2
      %v880 = vsel %vm871, %v877, %v879
      %v881 = vrot.slane %v631, 2
      %v882 = vsel %vm871, %v879, %v881
      %v883 = vrot.slane %v870, 2
      %v884 = vsel %vm871, %v881, %v883
      %v886 = vsel %vm426, %v874, 0
      %v889 = vsel %vm426, %v876, 0
      %v892 = vsel %vm426, %v878, 0
      %v895 = vsel %vm426, %v880, 0
      %v898 = vsel %vm426, %v882, 0
      %v901 = vsel %vm426, %v884, 0
      %v904 = vsel %vm426, %v883, 0
      %v907 = vand.u32 %v864, %v451
      %909 = vmatpush.bf16.msra.mxu0 0
      %910 = vmatpush.bf16.msra.mxu0 0
      %911 = vmatpush.bf16.msra.mxu0 0
      %912 = vmatpush.bf16.msra.mxu0 0
      %913 = vmatpush.bf16.msra.mxu0 0
      %914 = vmatpush.bf16.msra.mxu0 0
      %915 = vmatpush.bf16.msra.mxu0 0
      %916 = vmatpush.bf16.msra.mxu0 %v907
      %917 = vmatmul.bf16.gmra.mxu0 %v886
      %v918 = vpop.f32.mrf.mxu0
      %v919 = vadd.f32 0.0, %v918
      %v920 = vpop.f32.mrf.mxu0
      %v921 = vadd.f32 0.0, %v920
      %922 = vmatmul.bf16.gmra.mxu0 %v889
      %v923 = vpop.f32.mrf.mxu0
      %v924 = vadd.f32 0.0, %v923
      %v925 = vpop.f32.mrf.mxu0
      %v926 = vadd.f32 0.0, %v925
      %927 = vmatmul.bf16.gmra.mxu0 %v892
      %v928 = vpop.f32.mrf.mxu0
      %v929 = vadd.f32 0.0, %v928
      %v930 = vpop.f32.mrf.mxu0
      %v931 = vadd.f32 0.0, %v930
      %932 = vmatmul.bf16.gmra.mxu0 %v895
      %v933 = vpop.f32.mrf.mxu0
      %v934 = vadd.f32 0.0, %v933
      %v935 = vpop.f32.mrf.mxu0
      %v936 = vadd.f32 0.0, %v935
      %937 = vmatmul.bf16.gmra.mxu0 %v898
      %v938 = vpop.f32.mrf.mxu0
      %v939 = vadd.f32 0.0, %v938
      %v940 = vpop.f32.mrf.mxu0
      %v941 = vadd.f32 0.0, %v940
      %942 = vmatmul.bf16.gmra.mxu0 %v901
      %v943 = vpop.f32.mrf.mxu0
      %v944 = vadd.f32 0.0, %v943
      %v945 = vpop.f32.mrf.mxu0
      %v946 = vadd.f32 0.0, %v945
      %947 = vmatmul.bf16.gmra.mxu0 %v904
      %v948 = vpop.f32.mrf.mxu0
      %v949 = vadd.f32 0.0, %v948
      %v950 = vpop.f32.mrf.mxu0
      %951 = vdwg.mxu0
      %v952 = vadd.f32 %v759, %v919
      %v953 = vadd.f32 %v761, %v921
      %v954 = vadd.f32 %v764, %v924
      %v955 = vadd.f32 %v766, %v926
      %v956 = vadd.f32 %v769, %v929
      %v957 = vadd.f32 %v771, %v931
      %v958 = vadd.f32 %v774, %v934
      %v959 = vadd.f32 %v776, %v936
      %v960 = vadd.f32 %v779, %v939
      %v961 = vadd.f32 %v781, %v941
      %v962 = vadd.f32 %v784, %v944
      %v963 = vadd.f32 %v786, %v946
      %v964 = vadd.f32 %v789, %v949
      %v965 = vld [vmem:[%s300 + $0xc] sm:$0xe]
      %v966 = vld [vmem:[%s300 + $0x10] sm:$0xf]
      %v967 = vld [vmem:[%s300 + $0x14] sm:$0xf]
      %v968 = vld [vmem:[%s300 + $0x18] sm:$0xf]
      %v969 = vld [vmem:[%s300 + $0x1c] sm:$0xf]
      %v970 = vld [vmem:[%s300 + $0x20] sm:$0xf]
      %v971 = vld [vmem:[%s300 + $0x24] sm:$0xf]
      %v972 = vld [vmem:[%s300 + $0x28] sm:$0xf]
      %v973 = vld [vmem:[%s300 + $0x2c] sm:$0xf]
      %v974 = vld [vmem:[%s300 + $0x30] sm:$0xf]
      %v975 = vld [vmem:[%s300 + $0x34] sm:$0xf]
      %v976 = vld [vmem:[%s300 + $0x38] sm:$0xf]
      %v977 = vld [vmem:[%s300 + $0x3c] sm:$0xf]
      %v978 = vld [vmem:[%s300 + $0x40] sm:$0x3]
      %s979 = scalar_lea.vmem %s1, 12
      %v980 = vld [vmem:[%s979] sm:$0x7]
      %v995 = vunpack.c.l.b16 %v965
      %v996 = vunpack.c.l.b16 %v966
      %v997 = vunpack.c.l.b16 %v967
      %v998 = vunpack.c.l.b16 %v968
      %v999 = vunpack.c.l.b16 %v969
      %v1000 = vunpack.c.l.b16 %v970
      %v1001 = vunpack.c.l.b16 %v971
      %v1002 = vunpack.c.l.b16 %v972
      %v1003 = vunpack.c.l.b16 %v973
      %v1004 = vunpack.c.l.b16 %v974
      %v1005 = vunpack.c.l.b16 %v975
      %v1006 = vunpack.c.l.b16 %v976
      %v1007 = vunpack.c.l.b16 %v977
      %v1008 = vunpack.c.l.b16 %v978
      %v1009 = vpack.c.b16 %v996, %v995
      %v1010 = vpack.c.b16 %v998, %v997
      %v1011 = vpack.c.b16 %v1000, %v999
      %v1012 = vpack.c.b16 %v1002, %v1001
      %v1013 = vpack.c.b16 %v1004, %v1003
      %v1014 = vpack.c.b16 %v1006, %v1005
      %v1015 = vpack.c.b16 %v1008, %v1007
      %vm1016 = vsmask.f32 6400
      %v1018 = vshrl.u32 %v1009, 16
      %v1020 = vrot.slane %v1018, 1
      %v1021 = vshll.u32 %v1009, 16
      %v1023 = vrot.slane %v1021, 2
      %v1024 = vor.u32 %v1020, %v1023
      %v1026 = vshrl.u32 %v1010, 16
      %v1028 = vrot.slane %v1026, 1
      %v1029 = vshll.u32 %v1010, 16
      %v1031 = vrot.slane %v1029, 2
      %v1032 = vor.u32 %v1028, %v1031
      %v1033 = vsel %vm1016, %v1024, %v1032
      %v1035 = vshrl.u32 %v1011, 16
      %v1037 = vrot.slane %v1035, 1
      %v1038 = vshll.u32 %v1011, 16
      %v1040 = vrot.slane %v1038, 2
      %v1041 = vor.u32 %v1037, %v1040
      %v1042 = vsel %vm1016, %v1032, %v1041
      %v1044 = vshrl.u32 %v1012, 16
      %v1046 = vrot.slane %v1044, 1
      %v1047 = vshll.u32 %v1012, 16
      %v1049 = vrot.slane %v1047, 2
      %v1050 = vor.u32 %v1046, %v1049
      %v1051 = vsel %vm1016, %v1041, %v1050
      %v1053 = vshrl.u32 %v1013, 16
      %v1055 = vrot.slane %v1053, 1
      %v1056 = vshll.u32 %v1013, 16
      %v1058 = vrot.slane %v1056, 2
      %v1059 = vor.u32 %v1055, %v1058
      %v1060 = vsel %vm1016, %v1050, %v1059
      %v1062 = vshrl.u32 %v1014, 16
      %v1064 = vrot.slane %v1062, 1
      %v1065 = vshll.u32 %v1014, 16
      %v1067 = vrot.slane %v1065, 2
      %v1068 = vor.u32 %v1064, %v1067
      %v1069 = vsel %vm1016, %v1059, %v1068
      %v1071 = vshrl.u32 %v1015, 16
      %v1073 = vrot.slane %v1071, 1
      %v1074 = vshll.u32 %v1015, 16
      %v1076 = vrot.slane %v1074, 2
      %v1077 = vor.u32 %v1073, %v1076
      %v1078 = vsel %vm1016, %v1068, %v1077
      %v1080 = vsel %vm426, %v1033, 0
      %v1083 = vsel %vm426, %v1042, 0
      %v1086 = vsel %vm426, %v1051, 0
      %v1089 = vsel %vm426, %v1060, 0
      %v1092 = vsel %vm426, %v1069, 0
      %v1095 = vsel %vm426, %v1078, 0
      %v1098 = vsel %vm426, %v1077, 0
      %v1101 = vand.u32 %v980, %v451
      %1103 = vmatpush.bf16.msra.mxu0 0
      %1104 = vmatpush.bf16.msra.mxu0 0
      %1105 = vmatpush.bf16.msra.mxu0 0
      %1106 = vmatpush.bf16.msra.mxu0 0
      %1107 = vmatpush.bf16.msra.mxu0 0
      %1108 = vmatpush.bf16.msra.mxu0 0
      %1109 = vmatpush.bf16.msra.mxu0 0
      %1110 = vmatpush.bf16.msra.mxu0 %v1101
      %1111 = vmatmul.bf16.gmra.mxu0 %v1080
      %v1112 = vpop.f32.mrf.mxu0
      %v1113 = vadd.f32 0.0, %v1112
      %v1114 = vpop.f32.mrf.mxu0
      %v1115 = vadd.f32 0.0, %v1114
      %1116 = vmatmul.bf16.gmra.mxu0 %v1083
      %v1117 = vpop.f32.mrf.mxu0
      %v1118 = vadd.f32 0.0, %v1117
      %v1119 = vpop.f32.mrf.mxu0
      %v1120 = vadd.f32 0.0, %v1119
      %1121 = vmatmul.bf16.gmra.mxu0 %v1086
      %v1122 = vpop.f32.mrf.mxu0
      %v1123 = vadd.f32 0.0, %v1122
      %v1124 = vpop.f32.mrf.mxu0
      %v1125 = vadd.f32 0.0, %v1124
      %1126 = vmatmul.bf16.gmra.mxu0 %v1089
      %v1127 = vpop.f32.mrf.mxu0
      %v1128 = vadd.f32 0.0, %v1127
      %v1129 = vpop.f32.mrf.mxu0
      %v1130 = vadd.f32 0.0, %v1129
      %1131 = vmatmul.bf16.gmra.mxu0 %v1092
      %v1132 = vpop.f32.mrf.mxu0
      %v1133 = vadd.f32 0.0, %v1132
      %v1134 = vpop.f32.mrf.mxu0
      %v1135 = vadd.f32 0.0, %v1134
      %1136 = vmatmul.bf16.gmra.mxu0 %v1095
      %v1137 = vpop.f32.mrf.mxu0
      %v1138 = vadd.f32 0.0, %v1137
      %v1139 = vpop.f32.mrf.mxu0
      %v1140 = vadd.f32 0.0, %v1139
      %1141 = vmatmul.bf16.gmra.mxu0 %v1098
      %v1142 = vpop.f32.mrf.mxu0
      %v1143 = vadd.f32 0.0, %v1142
      %v1144 = vpop.f32.mrf.mxu0
      %1145 = vdwg.mxu0
      %v1146 = vadd.f32 %v848, %v1113
      %v1147 = vadd.f32 %v849, %v1115
      %v1148 = vadd.f32 %v850, %v1118
      %v1149 = vadd.f32 %v851, %v1120
      %v1150 = vadd.f32 %v852, %v1123
      %v1151 = vadd.f32 %v853, %v1125
      %v1152 = vadd.f32 %v854, %v1128
      %v1153 = vadd.f32 %v855, %v1130
      %v1154 = vadd.f32 %v856, %v1133
      %v1155 = vadd.f32 %v857, %v1135
      %v1156 = vadd.f32 %v858, %v1138
      %v1157 = vadd.f32 %v859, %v1140
      %v1158 = vadd.f32 %v860, %v1143
      %v1159 = vld [vmem:[%s300 + $0x40] sm:$0x1]
      %s1160 = scalar_lea.vmem %s3, 12
      %v1161 = vld [vmem:[%s1160] sm:$0x7]
      %v1163 = vunpack.c.l.b16 %v1159
      %v1164 = vpack.c.b16 %v1163, %v1007
      %v1165 = vrot.slane %v1009, 1
      %v1166 = vrot.slane %v1010, 1
      %v1167 = vsel %vm633, %v1165, %v1166
      %v1168 = vrot.slane %v1011, 1
      %v1169 = vsel %vm633, %v1166, %v1168
      %v1170 = vrot.slane %v1012, 1
      %v1171 = vsel %vm633, %v1168, %v1170
      %v1172 = vrot.slane %v1013, 1
      %v1173 = vsel %vm633, %v1170, %v1172
      %v1174 = vrot.slane %v1014, 1
      %v1175 = vsel %vm633, %v1172, %v1174
      %v1176 = vrot.slane %v1164, 1
      %v1177 = vsel %vm633, %v1174, %v1176
      %v1179 = vsel %vm426, %v1167, 0
      %v1182 = vsel %vm426, %v1169, 0
      %v1185 = vsel %vm426, %v1171, 0
      %v1188 = vsel %vm426, %v1173, 0
      %v1191 = vsel %vm426, %v1175, 0
      %v1194 = vsel %vm426, %v1177, 0
      %v1197 = vsel %vm426, %v1176, 0
      %v1200 = vand.u32 %v1161, %v451
      %1202 = vmatpush.bf16.msra.mxu0 0
      %1203 = vmatpush.bf16.msra.mxu0 0
      %1204 = vmatpush.bf16.msra.mxu0 0
      %1205 = vmatpush.bf16.msra.mxu0 0
      %1206 = vmatpush.bf16.msra.mxu0 0
      %1207 = vmatpush.bf16.msra.mxu0 0
      %1208 = vmatpush.bf16.msra.mxu0 0
      %1209 = vmatpush.bf16.msra.mxu0 %v1200
      %1210 = vmatmul.bf16.gmra.mxu0 %v1179
      %v1211 = vpop.f32.mrf.mxu0
      %v1212 = vadd.f32 0.0, %v1211
      %v1213 = vpop.f32.mrf.mxu0
      %v1214 = vadd.f32 0.0, %v1213
      %1215 = vmatmul.bf16.gmra.mxu0 %v1182
      %v1216 = vpop.f32.mrf.mxu0
      %v1217 = vadd.f32 0.0, %v1216
      %v1218 = vpop.f32.mrf.mxu0
      %v1219 = vadd.f32 0.0, %v1218
      %1220 = vmatmul.bf16.gmra.mxu0 %v1185
      %v1221 = vpop.f32.mrf.mxu0
      %v1222 = vadd.f32 0.0, %v1221
      %v1223 = vpop.f32.mrf.mxu0
      %v1224 = vadd.f32 0.0, %v1223
      %1225 = vmatmul.bf16.gmra.mxu0 %v1188
      %v1226 = vpop.f32.mrf.mxu0
      %v1227 = vadd.f32 0.0, %v1226
      %v1228 = vpop.f32.mrf.mxu0
      %v1229 = vadd.f32 0.0, %v1228
      %1230 = vmatmul.bf16.gmra.mxu0 %v1191
      %v1231 = vpop.f32.mrf.mxu0
      %v1232 = vadd.f32 0.0, %v1231
      %v1233 = vpop.f32.mrf.mxu0
      %v1234 = vadd.f32 0.0, %v1233
      %1235 = vmatmul.bf16.gmra.mxu0 %v1194
      %v1236 = vpop.f32.mrf.mxu0
      %v1237 = vadd.f32 0.0, %v1236
      %v1238 = vpop.f32.mrf.mxu0
      %v1239 = vadd.f32 0.0, %v1238
      %1240 = vmatmul.bf16.gmra.mxu0 %v1197
      %v1241 = vpop.f32.mrf.mxu0
      %v1242 = vadd.f32 0.0, %v1241
      %v1243 = vpop.f32.mrf.mxu0
      %1244 = vdwg.mxu0
      %v1245 = vadd.f32 %v952, %v1212
      %v1246 = vadd.f32 %v953, %v1214
      %v1247 = vadd.f32 %v954, %v1217
      %v1248 = vadd.f32 %v955, %v1219
      %v1249 = vadd.f32 %v956, %v1222
      %v1250 = vadd.f32 %v957, %v1224
      %v1251 = vadd.f32 %v958, %v1227
      %v1252 = vadd.f32 %v959, %v1229
      %v1253 = vadd.f32 %v960, %v1232
      %v1254 = vadd.f32 %v961, %v1234
      %v1255 = vadd.f32 %v962, %v1237
      %v1256 = vadd.f32 %v963, %v1239
      %v1257 = vadd.f32 %v964, %v1242
      %v1258 = vld [vmem:[%s300 + $0xc] sm:$0xc]
      %s1259 = scalar_lea.vmem %s1, 16
      %v1260 = vld [vmem:[%s1259] sm:$0x7]
      %v1262 = vunpack.c.l.b16 %v1258
      %v1263 = vpack.c.b16 %v996, %v1262
      %v1264 = vrot.slane %v1263, 2
      %v1265 = vrot.slane %v1010, 2
      %v1266 = vsel %vm871, %v1264, %v1265
      %v1267 = vrot.slane %v1011, 2
      %v1268 = vsel %vm871, %v1265, %v1267
      %v1269 = vrot.slane %v1012, 2
      %v1270 = vsel %vm871, %v1267, %v1269
      %v1271 = vrot.slane %v1013, 2
      %v1272 = vsel %vm871, %v1269, %v1271
      %v1273 = vrot.slane %v1014, 2
      %v1274 = vsel %vm871, %v1271, %v1273
      %v1275 = vrot.slane %v1015, 2
      %v1276 = vsel %vm871, %v1273, %v1275
      %v1278 = vsel %vm426, %v1266, 0
      %v1281 = vsel %vm426, %v1268, 0
      %v1284 = vsel %vm426, %v1270, 0
      %v1287 = vsel %vm426, %v1272, 0
      %v1290 = vsel %vm426, %v1274, 0
      %v1293 = vsel %vm426, %v1276, 0
      %v1296 = vsel %vm426, %v1275, 0
      %v1299 = vand.u32 %v1260, %v451
      %1301 = vmatpush.bf16.msra.mxu0 0
      %1302 = vmatpush.bf16.msra.mxu0 0
      %1303 = vmatpush.bf16.msra.mxu0 0
      %1304 = vmatpush.bf16.msra.mxu0 0
      %1305 = vmatpush.bf16.msra.mxu0 0
      %1306 = vmatpush.bf16.msra.mxu0 0
      %1307 = vmatpush.bf16.msra.mxu0 0
      %1308 = vmatpush.bf16.msra.mxu0 %v1299
      %1309 = vmatmul.bf16.gmra.mxu0 %v1278
      %v1310 = vpop.f32.mrf.mxu0
      %v1311 = vadd.f32 0.0, %v1310
      %v1312 = vpop.f32.mrf.mxu0
      %v1313 = vadd.f32 0.0, %v1312
      %1314 = vmatmul.bf16.gmra.mxu0 %v1281
      %v1315 = vpop.f32.mrf.mxu0
      %v1316 = vadd.f32 0.0, %v1315
      %v1317 = vpop.f32.mrf.mxu0
      %v1318 = vadd.f32 0.0, %v1317
      %1319 = vmatmul.bf16.gmra.mxu0 %v1284
      %v1320 = vpop.f32.mrf.mxu0
      %v1321 = vadd.f32 0.0, %v1320
      %v1322 = vpop.f32.mrf.mxu0
      %v1323 = vadd.f32 0.0, %v1322
      %1324 = vmatmul.bf16.gmra.mxu0 %v1287
      %v1325 = vpop.f32.mrf.mxu0
      %v1326 = vadd.f32 0.0, %v1325
      %v1327 = vpop.f32.mrf.mxu0
      %v1328 = vadd.f32 0.0, %v1327
      %1329 = vmatmul.bf16.gmra.mxu0 %v1290
      %v1330 = vpop.f32.mrf.mxu0
      %v1331 = vadd.f32 0.0, %v1330
      %v1332 = vpop.f32.mrf.mxu0
      %v1333 = vadd.f32 0.0, %v1332
      %1334 = vmatmul.bf16.gmra.mxu0 %v1293
      %v1335 = vpop.f32.mrf.mxu0
      %v1336 = vadd.f32 0.0, %v1335
      %v1337 = vpop.f32.mrf.mxu0
      %v1338 = vadd.f32 0.0, %v1337
      %1339 = vmatmul.bf16.gmra.mxu0 %v1296
      %v1340 = vpop.f32.mrf.mxu0
      %v1341 = vadd.f32 0.0, %v1340
      %v1342 = vpop.f32.mrf.mxu0
      %1343 = vdwg.mxu0
      %v1344 = vadd.f32 %v1146, %v1311
      %v1345 = vadd.f32 %v1147, %v1313
      %v1346 = vadd.f32 %v1148, %v1316
      %v1347 = vadd.f32 %v1149, %v1318
      %v1348 = vadd.f32 %v1150, %v1321
      %v1349 = vadd.f32 %v1151, %v1323
      %v1350 = vadd.f32 %v1152, %v1326
      %v1351 = vadd.f32 %v1153, %v1328
      %v1352 = vadd.f32 %v1154, %v1331
      %v1353 = vadd.f32 %v1155, %v1333
      %v1354 = vadd.f32 %v1156, %v1336
      %v1355 = vadd.f32 %v1157, %v1338
      %v1356 = vadd.f32 %v1158, %v1341
      %s1357 = scalar_lea.vmem %s3, 16
      %v1358 = vld [vmem:[%s1357] sm:$0x7]
      %v1360 = vand.u32 %v1358, %v451
      %1362 = vmatpush.bf16.msra.mxu0 0
      %1363 = vmatpush.bf16.msra.mxu0 0
      %1364 = vmatpush.bf16.msra.mxu0 0
      %1365 = vmatpush.bf16.msra.mxu0 0
      %1366 = vmatpush.bf16.msra.mxu0 0
      %1367 = vmatpush.bf16.msra.mxu0 0
      %1368 = vmatpush.bf16.msra.mxu0 0
      %1369 = vmatpush.bf16.msra.mxu0 %v1360
      %1370 = vmatmul.bf16.gmra.mxu0 %v1278
      %v1371 = vpop.f32.mrf.mxu0
      %v1372 = vadd.f32 0.0, %v1371
      %v1373 = vpop.f32.mrf.mxu0
      %v1374 = vadd.f32 0.0, %v1373
      %1375 = vmatmul.bf16.gmra.mxu0 %v1281
      %v1376 = vpop.f32.mrf.mxu0
      %v1377 = vadd.f32 0.0, %v1376
      %v1378 = vpop.f32.mrf.mxu0
      %v1379 = vadd.f32 0.0, %v1378
      %1380 = vmatmul.bf16.gmra.mxu0 %v1284
      %v1381 = vpop.f32.mrf.mxu0
      %v1382 = vadd.f32 0.0, %v1381
      %v1383 = vpop.f32.mrf.mxu0
      %v1384 = vadd.f32 0.0, %v1383
      %1385 = vmatmul.bf16.gmra.mxu0 %v1287
      %v1386 = vpop.f32.mrf.mxu0
      %v1387 = vadd.f32 0.0, %v1386
      %v1388 = vpop.f32.mrf.mxu0
      %v1389 = vadd.f32 0.0, %v1388
      %1390 = vmatmul.bf16.gmra.mxu0 %v1290
      %v1391 = vpop.f32.mrf.mxu0
      %v1392 = vadd.f32 0.0, %v1391
      %v1393 = vpop.f32.mrf.mxu0
      %v1394 = vadd.f32 0.0, %v1393
      %1395 = vmatmul.bf16.gmra.mxu0 %v1293
      %v1396 = vpop.f32.mrf.mxu0
      %v1397 = vadd.f32 0.0, %v1396
      %v1398 = vpop.f32.mrf.mxu0
      %v1399 = vadd.f32 0.0, %v1398
      %1400 = vmatmul.bf16.gmra.mxu0 %v1296
      %v1401 = vpop.f32.mrf.mxu0
      %v1402 = vadd.f32 0.0, %v1401
      %v1403 = vpop.f32.mrf.mxu0
      %1404 = vdwg.mxu0
      %v1405 = vadd.f32 %v1245, %v1372
      %v1406 = vadd.f32 %v1246, %v1374
      %v1407 = vadd.f32 %v1247, %v1377
      %v1408 = vadd.f32 %v1248, %v1379
      %v1409 = vadd.f32 %v1249, %v1382
      %v1410 = vadd.f32 %v1250, %v1384
      %v1411 = vadd.f32 %v1251, %v1387
      %v1412 = vadd.f32 %v1252, %v1389
      %v1413 = vadd.f32 %v1253, %v1392
      %v1414 = vadd.f32 %v1254, %v1394
      %v1415 = vadd.f32 %v1255, %v1397
      %v1416 = vadd.f32 %v1256, %v1399
      %v1417 = vadd.f32 %v1257, %v1402
      %v1418 = vld [vmem:[%s300 + $0x40] sm:$0x7]
      %s1419 = scalar_lea.vmem %s1, 20
      %v1420 = vld [vmem:[%s1419] sm:$0x7]
      %v1422 = vunpack.c.l.b16 %v1418
      %v1423 = vpack.c.b16 %v1422, %v1007
      %vm1424 = vsmask.f32 5376
      %v1426 = vshrl.u32 %v1263, 16
      %v1428 = vrot.slane %v1426, 2
      %v1429 = vshll.u32 %v1263, 16
      %v1431 = vrot.slane %v1429, 3
      %v1432 = vor.u32 %v1428, %v1431
      %v1433 = vrot.slane %v1026, 2
      %v1434 = vrot.slane %v1029, 3
      %v1435 = vor.u32 %v1433, %v1434
      %v1436 = vsel %vm1424, %v1432, %v1435
      %v1437 = vrot.slane %v1035, 2
      %v1438 = vrot.slane %v1038, 3
      %v1439 = vor.u32 %v1437, %v1438
      %v1440 = vsel %vm1424, %v1435, %v1439
      %v1441 = vrot.slane %v1044, 2
      %v1442 = vrot.slane %v1047, 3
      %v1443 = vor.u32 %v1441, %v1442
      %v1444 = vsel %vm1424, %v1439, %v1443
      %v1445 = vrot.slane %v1053, 2
      %v1446 = vrot.slane %v1056, 3
      %v1447 = vor.u32 %v1445, %v1446
      %v1448 = vsel %vm1424, %v1443, %v1447
      %v1449 = vrot.slane %v1062, 2
      %v1450 = vrot.slane %v1065, 3
      %v1451 = vor.u32 %v1449, %v1450
      %v1452 = vsel %vm1424, %v1447, %v1451
      %v1454 = vshrl.u32 %v1423, 16
      %v1456 = vrot.slane %v1454, 2
      %v1457 = vshll.u32 %v1423, 16
      %v1459 = vrot.slane %v1457, 3
      %v1460 = vor.u32 %v1456, %v1459
      %v1461 = vsel %vm1424, %v1451, %v1460
      %v1463 = vsel %vm426, %v1436, 0
      %v1466 = vsel %vm426, %v1440, 0
      %v1469 = vsel %vm426, %v1444, 0
      %v1472 = vsel %vm426, %v1448, 0
      %v1475 = vsel %vm426, %v1452, 0
      %v1478 = vsel %vm426, %v1461, 0
      %v1481 = vsel %vm426, %v1460, 0
      %v1484 = vand.u32 %v1420, %v451
      %1486 = vmatpush.bf16.msra.mxu0 0
      %1487 = vmatpush.bf16.msra.mxu0 0
      %1488 = vmatpush.bf16.msra.mxu0 0
      %1489 = vmatpush.bf16.msra.mxu0 0
      %1490 = vmatpush.bf16.msra.mxu0 0
      %1491 = vmatpush.bf16.msra.mxu0 0
      %1492 = vmatpush.bf16.msra.mxu0 0
      %1493 = vmatpush.bf16.msra.mxu0 %v1484
      %1494 = vmatmul.bf16.gmra.mxu0 %v1463
      %v1495 = vpop.f32.mrf.mxu0
      %v1496 = vadd.f32 0.0, %v1495
      %v1497 = vpop.f32.mrf.mxu0
      %v1498 = vadd.f32 0.0, %v1497
      %1499 = vmatmul.bf16.gmra.mxu0 %v1466
      %v1500 = vpop.f32.mrf.mxu0
      %v1501 = vadd.f32 0.0, %v1500
      %v1502 = vpop.f32.mrf.mxu0
      %v1503 = vadd.f32 0.0, %v1502
      %1504 = vmatmul.bf16.gmra.mxu0 %v1469
      %v1505 = vpop.f32.mrf.mxu0
      %v1506 = vadd.f32 0.0, %v1505
      %v1507 = vpop.f32.mrf.mxu0
      %v1508 = vadd.f32 0.0, %v1507
      %1509 = vmatmul.bf16.gmra.mxu0 %v1472
      %v1510 = vpop.f32.mrf.mxu0
      %v1511 = vadd.f32 0.0, %v1510
      %v1512 = vpop.f32.mrf.mxu0
      %v1513 = vadd.f32 0.0, %v1512
      %1514 = vmatmul.bf16.gmra.mxu0 %v1475
      %v1515 = vpop.f32.mrf.mxu0
      %v1516 = vadd.f32 0.0, %v1515
      %v1517 = vpop.f32.mrf.mxu0
      %v1518 = vadd.f32 0.0, %v1517
      %1519 = vmatmul.bf16.gmra.mxu0 %v1478
      %v1520 = vpop.f32.mrf.mxu0
      %v1521 = vadd.f32 0.0, %v1520
      %v1522 = vpop.f32.mrf.mxu0
      %v1523 = vadd.f32 0.0, %v1522
      %1524 = vmatmul.bf16.gmra.mxu0 %v1481
      %v1525 = vpop.f32.mrf.mxu0
      %v1526 = vadd.f32 0.0, %v1525
      %v1527 = vpop.f32.mrf.mxu0
      %1528 = vdwg.mxu0
      %v1529 = vadd.f32 %v1344, %v1496
      %v1530 = vadd.f32 %v1345, %v1498
      %v1531 = vadd.f32 %v1346, %v1501
      %v1532 = vadd.f32 %v1347, %v1503
      %v1533 = vadd.f32 %v1348, %v1506
      %v1534 = vadd.f32 %v1349, %v1508
      %v1535 = vadd.f32 %v1350, %v1511
      %v1536 = vadd.f32 %v1351, %v1513
      %v1537 = vadd.f32 %v1352, %v1516
      %v1538 = vadd.f32 %v1353, %v1518
      %v1539 = vadd.f32 %v1354, %v1521
      %v1540 = vadd.f32 %v1355, %v1523
      %v1541 = vadd.f32 %v1356, %v1526
      %v1542 = vld [vmem:[%s300 + $0xc] sm:$0x8]
      %s1543 = scalar_lea.vmem %s3, 20
      %v1544 = vld [vmem:[%s1543] sm:$0x7]
      %v1546 = vunpack.c.l.b16 %v1542
      %v1547 = vpack.c.b16 %v996, %v1546
      %v1548 = vrot.slane %v1547, 3
      %v1549 = vrot.slane %v1010, 3
      %v1550 = vsel %vm501, %v1548, %v1549
      %v1551 = vrot.slane %v1011, 3
      %v1552 = vsel %vm501, %v1549, %v1551
      %v1553 = vrot.slane %v1012, 3
      %v1554 = vsel %vm501, %v1551, %v1553
      %v1555 = vrot.slane %v1013, 3
      %v1556 = vsel %vm501, %v1553, %v1555
      %v1557 = vrot.slane %v1014, 3
      %v1558 = vsel %vm501, %v1555, %v1557
      %v1559 = vrot.slane %v1423, 3
      %v1560 = vsel %vm501, %v1557, %v1559
      %v1562 = vsel %vm426, %v1550, 0
      %v1565 = vsel %vm426, %v1552, 0
      %v1568 = vsel %vm426, %v1554, 0
      %v1571 = vsel %vm426, %v1556, 0
      %v1574 = vsel %vm426, %v1558, 0
      %v1577 = vsel %vm426, %v1560, 0
      %v1580 = vsel %vm426, %v1559, 0
      %v1583 = vand.u32 %v1544, %v451
      %1585 = vmatpush.bf16.msra.mxu0 0
      %1586 = vmatpush.bf16.msra.mxu0 0
      %1587 = vmatpush.bf16.msra.mxu0 0
      %1588 = vmatpush.bf16.msra.mxu0 0
      %1589 = vmatpush.bf16.msra.mxu0 0
      %1590 = vmatpush.bf16.msra.mxu0 0
      %1591 = vmatpush.bf16.msra.mxu0 0
      %1592 = vmatpush.bf16.msra.mxu0 %v1583
      %1593 = vmatmul.bf16.gmra.mxu0 %v1562
      %v1594 = vpop.f32.mrf.mxu0
      %v1595 = vadd.f32 0.0, %v1594
      %v1596 = vpop.f32.mrf.mxu0
      %v1597 = vadd.f32 0.0, %v1596
      %1598 = vmatmul.bf16.gmra.mxu0 %v1565
      %v1599 = vpop.f32.mrf.mxu0
      %v1600 = vadd.f32 0.0, %v1599
      %v1601 = vpop.f32.mrf.mxu0
      %v1602 = vadd.f32 0.0, %v1601
      %1603 = vmatmul.bf16.gmra.mxu0 %v1568
      %v1604 = vpop.f32.mrf.mxu0
      %v1605 = vadd.f32 0.0, %v1604
      %v1606 = vpop.f32.mrf.mxu0
      %v1607 = vadd.f32 0.0, %v1606
      %1608 = vmatmul.bf16.gmra.mxu0 %v1571
      %v1609 = vpop.f32.mrf.mxu0
      %v1610 = vadd.f32 0.0, %v1609
      %v1611 = vpop.f32.mrf.mxu0
      %v1612 = vadd.f32 0.0, %v1611
      %1613 = vmatmul.bf16.gmra.mxu0 %v1574
      %v1614 = vpop.f32.mrf.mxu0
      %v1615 = vadd.f32 0.0, %v1614
      %v1616 = vpop.f32.mrf.mxu0
      %v1617 = vadd.f32 0.0, %v1616
      %1618 = vmatmul.bf16.gmra.mxu0 %v1577
      %v1619 = vpop.f32.mrf.mxu0
      %v1620 = vadd.f32 0.0, %v1619
      %v1621 = vpop.f32.mrf.mxu0
      %v1622 = vadd.f32 0.0, %v1621
      %1623 = vmatmul.bf16.gmra.mxu0 %v1580
      %v1624 = vpop.f32.mrf.mxu0
      %v1625 = vadd.f32 0.0, %v1624
      %v1626 = vpop.f32.mrf.mxu0
      %1627 = vdwg.mxu0
      %v1628 = vadd.f32 %v1405, %v1595
      %v1629 = vadd.f32 %v1406, %v1597
      %v1630 = vadd.f32 %v1407, %v1600
      %v1631 = vadd.f32 %v1408, %v1602
      %v1632 = vadd.f32 %v1409, %v1605
      %v1633 = vadd.f32 %v1410, %v1607
      %v1634 = vadd.f32 %v1411, %v1610
      %v1635 = vadd.f32 %v1412, %v1612
      %v1636 = vadd.f32 %v1413, %v1615
      %v1637 = vadd.f32 %v1414, %v1617
      %v1638 = vadd.f32 %v1415, %v1620
      %v1639 = vadd.f32 %v1416, %v1622
      %v1640 = vadd.f32 %v1417, %v1625
      %v1641 = vld [vmem:[%s300 + $0x14] sm:$0xf]
      %v1642 = vld [vmem:[%s300 + $0x18] sm:$0xf]
      %v1643 = vld [vmem:[%s300 + $0x1c] sm:$0xf]
      %v1644 = vld [vmem:[%s300 + $0x20] sm:$0xf]
      %v1645 = vld [vmem:[%s300 + $0x24] sm:$0xf]
      %v1646 = vld [vmem:[%s300 + $0x28] sm:$0xf]
      %v1647 = vld [vmem:[%s300 + $0x2c] sm:$0xf]
      %v1648 = vld [vmem:[%s300 + $0x30] sm:$0xf]
      %v1649 = vld [vmem:[%s300 + $0x34] sm:$0xf]
      %v1650 = vld [vmem:[%s300 + $0x38] sm:$0xf]
      %v1651 = vld [vmem:[%s300 + $0x3c] sm:$0xf]
      %v1652 = vld [vmem:[%s300 + $0x40] sm:$0xf]
      %v1653 = vld [vmem:[%s300 + $0x44] sm:$0xf]
      %s1654 = scalar_lea.vmem %s1, 24
      %v1655 = vld [vmem:[%s1654] sm:$0x7]
      %v1669 = vunpack.c.l.b16 %v1641
      %v1670 = vunpack.c.l.b16 %v1642
      %v1671 = vunpack.c.l.b16 %v1643
      %v1672 = vunpack.c.l.b16 %v1644
      %v1673 = vunpack.c.l.b16 %v1645
      %v1674 = vunpack.c.l.b16 %v1646
      %v1675 = vunpack.c.l.b16 %v1647
      %v1676 = vunpack.c.l.b16 %v1648
      %v1677 = vunpack.c.l.b16 %v1649
      %v1678 = vunpack.c.l.b16 %v1650
      %v1679 = vunpack.c.l.b16 %v1651
      %v1680 = vunpack.c.l.b16 %v1652
      %v1681 = vunpack.c.l.b16 %v1653
      %v1682 = vpack.c.b16 %v1670, %v1669
      %v1683 = vpack.c.b16 %v1672, %v1671
      %v1684 = vpack.c.b16 %v1674, %v1673
      %v1685 = vpack.c.b16 %v1676, %v1675
      %v1686 = vpack.c.b16 %v1678, %v1677
      %v1687 = vpack.c.b16 %v1680, %v1679
      %v1688 = vpack.c.b16 %v1681, %v1681
      %v1690 = vsel %vm426, %v1682, 0
      %v1693 = vsel %vm426, %v1683, 0
      %v1696 = vsel %vm426, %v1684, 0
      %v1699 = vsel %vm426, %v1685, 0
      %v1702 = vsel %vm426, %v1686, 0
      %v1705 = vsel %vm426, %v1687, 0
      %v1708 = vsel %vm426, %v1688, 0
      %v1711 = vand.u32 %v1655, %v451
      %1713 = vmatpush.bf16.msra.mxu0 0
      %1714 = vmatpush.bf16.msra.mxu0 0
      %1715 = vmatpush.bf16.msra.mxu0 0
      %1716 = vmatpush.bf16.msra.mxu0 0
      %1717 = vmatpush.bf16.msra.mxu0 0
      %1718 = vmatpush.bf16.msra.mxu0 0
      %1719 = vmatpush.bf16.msra.mxu0 0
      %1720 = vmatpush.bf16.msra.mxu0 %v1711
      %1721 = vmatmul.bf16.gmra.mxu0 %v1690
      %v1722 = vpop.f32.mrf.mxu0
      %v1723 = vadd.f32 0.0, %v1722
      %v1724 = vpop.f32.mrf.mxu0
      %v1725 = vadd.f32 0.0, %v1724
      %1726 = vmatmul.bf16.gmra.mxu0 %v1693
      %v1727 = vpop.f32.mrf.mxu0
      %v1728 = vadd.f32 0.0, %v1727
      %v1729 = vpop.f32.mrf.mxu0
      %v1730 = vadd.f32 0.0, %v1729
      %1731 = vmatmul.bf16.gmra.mxu0 %v1696
      %v1732 = vpop.f32.mrf.mxu0
      %v1733 = vadd.f32 0.0, %v1732
      %v1734 = vpop.f32.mrf.mxu0
      %v1735 = vadd.f32 0.0, %v1734
      %1736 = vmatmul.bf16.gmra.mxu0 %v1699
      %v1737 = vpop.f32.mrf.mxu0
      %v1738 = vadd.f32 0.0, %v1737
      %v1739 = vpop.f32.mrf.mxu0
      %v1740 = vadd.f32 0.0, %v1739
      %1741 = vmatmul.bf16.gmra.mxu0 %v1702
      %v1742 = vpop.f32.mrf.mxu0
      %v1743 = vadd.f32 0.0, %v1742
      %v1744 = vpop.f32.mrf.mxu0
      %v1745 = vadd.f32 0.0, %v1744
      %1746 = vmatmul.bf16.gmra.mxu0 %v1705
      %v1747 = vpop.f32.mrf.mxu0
      %v1748 = vadd.f32 0.0, %v1747
      %v1749 = vpop.f32.mrf.mxu0
      %v1750 = vadd.f32 0.0, %v1749
      %1751 = vmatmul.bf16.gmra.mxu0 %v1708
      %v1752 = vpop.f32.mrf.mxu0
      %v1753 = vadd.f32 0.0, %v1752
      %v1754 = vpop.f32.mrf.mxu0
      %1755 = vdwg.mxu0
      %v1756 = vadd.f32 %v1529, %v1723
      %v1757 = vadd.f32 %v1530, %v1725
      %v1758 = vadd.f32 %v1531, %v1728
      %v1759 = vadd.f32 %v1532, %v1730
      %v1760 = vadd.f32 %v1533, %v1733
      %v1761 = vadd.f32 %v1534, %v1735
      %v1762 = vadd.f32 %v1535, %v1738
      %v1763 = vadd.f32 %v1536, %v1740
      %v1764 = vadd.f32 %v1537, %v1743
      %v1765 = vadd.f32 %v1538, %v1745
      %v1766 = vadd.f32 %v1539, %v1748
      %v1767 = vadd.f32 %v1540, %v1750
      %v1768 = vadd.f32 %v1541, %v1753
      %v1769 = vld [vmem:[%s300 + $0x18] sm:$0xc]
      %v1770 = vld [vmem:[%s300 + $0x1c] sm:$0xf]
      %v1771 = vld [vmem:[%s300 + $0x20] sm:$0xf]
      %v1772 = vld [vmem:[%s300 + $0x24] sm:$0xf]
      %v1773 = vld [vmem:[%s300 + $0x28] sm:$0xf]
      %v1774 = vld [vmem:[%s300 + $0x2c] sm:$0xf]
      %v1775 = vld [vmem:[%s300 + $0x30] sm:$0xf]
      %v1776 = vld [vmem:[%s300 + $0x34] sm:$0xf]
      %v1777 = vld [vmem:[%s300 + $0x38] sm:$0xf]
      %v1778 = vld [vmem:[%s300 + $0x3c] sm:$0xf]
      %v1779 = vld [vmem:[%s300 + $0x40] sm:$0xf]
      %v1780 = vld [vmem:[%s300 + $0x44] sm:$0xf]
      %v1781 = vld [vmem:[%s300 + $0x48] sm:$0xf]
      %v1782 = vld [vmem:[%s300 + $0x4c] sm:$0x3]
      %s1783 = scalar_lea.vmem %s3, 24
      %v1784 = vld [vmem:[%s1783] sm:$0x7]
      %v1799 = vunpack.c.l.b16 %v1769
      %v1800 = vunpack.c.l.b16 %v1770
      %v1801 = vunpack.c.l.b16 %v1771
      %v1802 = vunpack.c.l.b16 %v1772
      %v1803 = vunpack.c.l.b16 %v1773
      %v1804 = vunpack.c.l.b16 %v1774
      %v1805 = vunpack.c.l.b16 %v1775
      %v1806 = vunpack.c.l.b16 %v1776
      %v1807 = vunpack.c.l.b16 %v1777
      %v1808 = vunpack.c.l.b16 %v1778
      %v1809 = vunpack.c.l.b16 %v1779
      %v1810 = vunpack.c.l.b16 %v1780
      %v1811 = vunpack.c.l.b16 %v1781
      %v1812 = vunpack.c.l.b16 %v1782
      %v1813 = vpack.c.b16 %v1800, %v1799
      %v1814 = vpack.c.b16 %v1802, %v1801
      %v1815 = vpack.c.b16 %v1804, %v1803
      %v1816 = vpack.c.b16 %v1806, %v1805
      %v1817 = vpack.c.b16 %v1808, %v1807
      %v1818 = vpack.c.b16 %v1810, %v1809
      %v1819 = vpack.c.b16 %v1812, %v1811
      %v1820 = vrot.slane %v1813, 2
      %v1821 = vrot.slane %v1814, 2
      %v1822 = vsel %vm871, %v1820, %v1821
      %v1823 = vrot.slane %v1815, 2
      %v1824 = vsel %vm871, %v1821, %v1823
      %v1825 = vrot.slane %v1816, 2
      %v1826 = vsel %vm871, %v1823, %v1825
      %v1827 = vrot.slane %v1817, 2
      %v1828 = vsel %vm871, %v1825, %v1827
      %v1829 = vrot.slane %v1818, 2
      %v1830 = vsel %vm871, %v1827, %v1829
      %v1831 = vrot.slane %v1819, 2
      %v1832 = vsel %vm871, %v1829, %v1831
      %v1834 = vsel %vm426, %v1822, 0
      %v1837 = vsel %vm426, %v1824, 0
      %v1840 = vsel %vm426, %v1826, 0
      %v1843 = vsel %vm426, %v1828, 0
      %v1846 = vsel %vm426, %v1830, 0
      %v1849 = vsel %vm426, %v1832, 0
      %v1852 = vsel %vm426, %v1831, 0
      %v1855 = vand.u32 %v1784, %v451
      %1857 = vmatpush.bf16.msra.mxu0 0
      %1858 = vmatpush.bf16.msra.mxu0 0
      %1859 = vmatpush.bf16.msra.mxu0 0
      %1860 = vmatpush.bf16.msra.mxu0 0
      %1861 = vmatpush.bf16.msra.mxu0 0
      %1862 = vmatpush.bf16.msra.mxu0 0
      %1863 = vmatpush.bf16.msra.mxu0 0
      %1864 = vmatpush.bf16.msra.mxu0 %v1855
      %1865 = vmatmul.bf16.gmra.mxu0 %v1834
      %v1866 = vpop.f32.mrf.mxu0
      %v1867 = vadd.f32 0.0, %v1866
      %v1868 = vpop.f32.mrf.mxu0
      %v1869 = vadd.f32 0.0, %v1868
      %1870 = vmatmul.bf16.gmra.mxu0 %v1837
      %v1871 = vpop.f32.mrf.mxu0
      %v1872 = vadd.f32 0.0, %v1871
      %v1873 = vpop.f32.mrf.mxu0
      %v1874 = vadd.f32 0.0, %v1873
      %1875 = vmatmul.bf16.gmra.mxu0 %v1840
      %v1876 = vpop.f32.mrf.mxu0
      %v1877 = vadd.f32 0.0, %v1876
      %v1878 = vpop.f32.mrf.mxu0
      %v1879 = vadd.f32 0.0, %v1878
      %1880 = vmatmul.bf16.gmra.mxu0 %v1843
      %v1881 = vpop.f32.mrf.mxu0
      %v1882 = vadd.f32 0.0, %v1881
      %v1883 = vpop.f32.mrf.mxu0
      %v1884 = vadd.f32 0.0, %v1883
      %1885 = vmatmul.bf16.gmra.mxu0 %v1846
      %v1886 = vpop.f32.mrf.mxu0
      %v1887 = vadd.f32 0.0, %v1886
      %v1888 = vpop.f32.mrf.mxu0
      %v1889 = vadd.f32 0.0, %v1888
      %1890 = vmatmul.bf16.gmra.mxu0 %v1849
      %v1891 = vpop.f32.mrf.mxu0
      %v1892 = vadd.f32 0.0, %v1891
      %v1893 = vpop.f32.mrf.mxu0
      %v1894 = vadd.f32 0.0, %v1893
      %1895 = vmatmul.bf16.gmra.mxu0 %v1852
      %v1896 = vpop.f32.mrf.mxu0
      %v1897 = vadd.f32 0.0, %v1896
      %v1898 = vpop.f32.mrf.mxu0
      %1899 = vdwg.mxu0
      %v1900 = vadd.f32 %v1628, %v1867
      %v1901 = vadd.f32 %v1629, %v1869
      %v1902 = vadd.f32 %v1630, %v1872
      %v1903 = vadd.f32 %v1631, %v1874
      %v1904 = vadd.f32 %v1632, %v1877
      %v1905 = vadd.f32 %v1633, %v1879
      %v1906 = vadd.f32 %v1634, %v1882
      %v1907 = vadd.f32 %v1635, %v1884
      %v1908 = vadd.f32 %v1636, %v1887
      %v1909 = vadd.f32 %v1637, %v1889
      %v1910 = vadd.f32 %v1638, %v1892
      %v1911 = vadd.f32 %v1639, %v1894
      %v1912 = vadd.f32 %v1640, %v1897
      %v1913 = vld [vmem:[%s300 + $0x14] sm:$0xf]
      %v1914 = vld [vmem:[%s300 + $0x18] sm:$0xf]
      %v1915 = vld [vmem:[%s300 + $0x1c] sm:$0xf]
      %v1916 = vld [vmem:[%s300 + $0x20] sm:$0xf]
      %v1917 = vld [vmem:[%s300 + $0x24] sm:$0xf]
      %v1918 = vld [vmem:[%s300 + $0x28] sm:$0xf]
      %v1919 = vld [vmem:[%s300 + $0x2c] sm:$0xf]
      %v1920 = vld [vmem:[%s300 + $0x30] sm:$0xf]
      %v1921 = vld [vmem:[%s300 + $0x34] sm:$0xf]
      %v1922 = vld [vmem:[%s300 + $0x38] sm:$0xf]
      %v1923 = vld [vmem:[%s300 + $0x3c] sm:$0xf]
      %v1924 = vld [vmem:[%s300 + $0x40] sm:$0xf]
      %v1925 = vld [vmem:[%s300 + $0x44] sm:$0xf]
      %v1926 = vld [vmem:[%s300 + $0x48] sm:$0x1]
      %s1927 = scalar_lea.vmem %s1, 28
      %v1928 = vld [vmem:[%s1927] sm:$0x7]
      %v1943 = vunpack.c.l.b16 %v1913
      %v1944 = vunpack.c.l.b16 %v1914
      %v1945 = vunpack.c.l.b16 %v1915
      %v1946 = vunpack.c.l.b16 %v1916
      %v1947 = vunpack.c.l.b16 %v1917
      %v1948 = vunpack.c.l.b16 %v1918
      %v1949 = vunpack.c.l.b16 %v1919
      %v1950 = vunpack.c.l.b16 %v1920
      %v1951 = vunpack.c.l.b16 %v1921
      %v1952 = vunpack.c.l.b16 %v1922
      %v1953 = vunpack.c.l.b16 %v1923
      %v1954 = vunpack.c.l.b16 %v1924
      %v1955 = vunpack.c.l.b16 %v1925
      %v1956 = vunpack.c.l.b16 %v1926
      %v1957 = vpack.c.b16 %v1944, %v1943
      %v1958 = vpack.c.b16 %v1946, %v1945
      %v1959 = vpack.c.b16 %v1948, %v1947
      %v1960 = vpack.c.b16 %v1950, %v1949
      %v1961 = vpack.c.b16 %v1952, %v1951
      %v1962 = vpack.c.b16 %v1954, %v1953
      %v1963 = vpack.c.b16 %v1956, %v1955
      %vm1964 = vsmask.f32 7424
      %v1966 = vshrl.u32 %v1957, 16
      %v1968 = vshll.u32 %v1957, 16
      %v1970 = vrot.slane %v1968, 1
      %v1971 = vor.u32 %v1966, %v1970
      %v1973 = vshll.u32 %v1958, 16
      %v1975 = vrot.slane %v1973, 1
      %v1976 = vsel %vm1964, %v1971, %v1975
      %v1977 = vshrl.u32 %v1958, 16
      %v1979 = vor.u32 %v1977, %v1975
      %v1981 = vshll.u32 %v1959, 16
      %v1983 = vrot.slane %v1981, 1
      %v1984 = vsel %vm1964, %v1979, %v1983
      %v1985 = vshrl.u32 %v1959, 16
      %v1987 = vor.u32 %v1985, %v1983
      %v1989 = vshll.u32 %v1960, 16
      %v1991 = vrot.slane %v1989, 1
      %v1992 = vsel %vm1964, %v1987, %v1991
      %v1993 = vshrl.u32 %v1960, 16
      %v1995 = vor.u32 %v1993, %v1991
      %v1997 = vshll.u32 %v1961, 16
      %v1999 = vrot.slane %v1997, 1
      %v2000 = vsel %vm1964, %v1995, %v1999
      %v2001 = vshrl.u32 %v1961, 16
      %v2003 = vor.u32 %v2001, %v1999
      %v2005 = vshll.u32 %v1962, 16
      %v2007 = vrot.slane %v2005, 1
      %v2008 = vsel %vm1964, %v2003, %v2007
      %v2009 = vshrl.u32 %v1962, 16
      %v2011 = vor.u32 %v2009, %v2007
      %v2013 = vshll.u32 %v1963, 16
      %v2015 = vrot.slane %v2013, 1
      %v2016 = vsel %vm1964, %v2011, %v2015
      %v2017 = vshrl.u32 %v1963, 16
      %v2019 = vor.u32 %v2017, %v2015
      %v2021 = vsel %vm426, %v1976, 0
      %v2024 = vsel %vm426, %v1984, 0
      %v2027 = vsel %vm426, %v1992, 0
      %v2030 = vsel %vm426, %v2000, 0
      %v2033 = vsel %vm426, %v2008, 0
      %v2036 = vsel %vm426, %v2016, 0
      %v2039 = vsel %vm426, %v2019, 0
      %v2042 = vand.u32 %v1928, %v451
      %2044 = vmatpush.bf16.msra.mxu0 0
      %2045 = vmatpush.bf16.msra.mxu0 0
      %2046 = vmatpush.bf16.msra.mxu0 0
      %2047 = vmatpush.bf16.msra.mxu0 0
      %2048 = vmatpush.bf16.msra.mxu0 0
      %2049 = vmatpush.bf16.msra.mxu0 0
      %2050 = vmatpush.bf16.msra.mxu0 0
      %2051 = vmatpush.bf16.msra.mxu0 %v2042
      %2052 = vmatmul.bf16.gmra.mxu0 %v2021
      %v2053 = vpop.f32.mrf.mxu0
      %v2054 = vadd.f32 0.0, %v2053
      %v2055 = vpop.f32.mrf.mxu0
      %v2056 = vadd.f32 0.0, %v2055
      %2057 = vmatmul.bf16.gmra.mxu0 %v2024
      %v2058 = vpop.f32.mrf.mxu0
      %v2059 = vadd.f32 0.0, %v2058
      %v2060 = vpop.f32.mrf.mxu0
      %v2061 = vadd.f32 0.0, %v2060
      %2062 = vmatmul.bf16.gmra.mxu0 %v2027
      %v2063 = vpop.f32.mrf.mxu0
      %v2064 = vadd.f32 0.0, %v2063
      %v2065 = vpop.f32.mrf.mxu0
      %v2066 = vadd.f32 0.0, %v2065
      %2067 = vmatmul.bf16.gmra.mxu0 %v2030
      %v2068 = vpop.f32.mrf.mxu0
      %v2069 = vadd.f32 0.0, %v2068
      %v2070 = vpop.f32.mrf.mxu0
      %v2071 = vadd.f32 0.0, %v2070
      %2072 = vmatmul.bf16.gmra.mxu0 %v2033
      %v2073 = vpop.f32.mrf.mxu0
      %v2074 = vadd.f32 0.0, %v2073
      %v2075 = vpop.f32.mrf.mxu0
      %v2076 = vadd.f32 0.0, %v2075
      %2077 = vmatmul.bf16.gmra.mxu0 %v2036
      %v2078 = vpop.f32.mrf.mxu0
      %v2079 = vadd.f32 0.0, %v2078
      %v2080 = vpop.f32.mrf.mxu0
      %v2081 = vadd.f32 0.0, %v2080
      %2082 = vmatmul.bf16.gmra.mxu0 %v2039
      %v2083 = vpop.f32.mrf.mxu0
      %v2084 = vadd.f32 0.0, %v2083
      %v2085 = vpop.f32.mrf.mxu0
      %2086 = vdwg.mxu0
      %v2087 = vadd.f32 %v1756, %v2054
      %v2088 = vadd.f32 %v1757, %v2056
      %v2089 = vadd.f32 %v1758, %v2059
      %v2090 = vadd.f32 %v1759, %v2061
      %v2091 = vadd.f32 %v1760, %v2064
      %v2092 = vadd.f32 %v1761, %v2066
      %v2093 = vadd.f32 %v1762, %v2069
      %v2094 = vadd.f32 %v1763, %v2071
      %v2095 = vadd.f32 %v1764, %v2074
      %v2096 = vadd.f32 %v1765, %v2076
      %v2097 = vadd.f32 %v1766, %v2079
      %v2098 = vadd.f32 %v1767, %v2081
      %v2099 = vadd.f32 %v1768, %v2084
      %v2100 = vld [vmem:[%s300 + $0x18] sm:$0x8]
      %v2101 = vld [vmem:[%s300 + $0x4c] sm:$0x7]
      %s2102 = scalar_lea.vmem %s3, 28
      %v2103 = vld [vmem:[%s2102] sm:$0x7]
      %v2106 = vunpack.c.l.b16 %v2100
      %v2107 = vunpack.c.l.b16 %v2101
      %v2108 = vpack.c.b16 %v1800, %v2106
      %v2109 = vpack.c.b16 %v2107, %v1811
      %v2110 = vrot.slane %v2108, 3
      %v2111 = vrot.slane %v1814, 3
      %v2112 = vsel %vm501, %v2110, %v2111
      %v2113 = vrot.slane %v1815, 3
      %v2114 = vsel %vm501, %v2111, %v2113
      %v2115 = vrot.slane %v1816, 3
      %v2116 = vsel %vm501, %v2113, %v2115
      %v2117 = vrot.slane %v1817, 3
      %v2118 = vsel %vm501, %v2115, %v2117
      %v2119 = vrot.slane %v1818, 3
      %v2120 = vsel %vm501, %v2117, %v2119
      %v2121 = vrot.slane %v2109, 3
      %v2122 = vsel %vm501, %v2119, %v2121
      %v2124 = vsel %vm426, %v2112, 0
      %v2127 = vsel %vm426, %v2114, 0
      %v2130 = vsel %vm426, %v2116, 0
      %v2133 = vsel %vm426, %v2118, 0
      %v2136 = vsel %vm426, %v2120, 0
      %v2139 = vsel %vm426, %v2122, 0
      %v2142 = vsel %vm426, %v2121, 0
      %v2145 = vand.u32 %v2103, %v451
      %2147 = vmatpush.bf16.msra.mxu0 0
      %2148 = vmatpush.bf16.msra.mxu0 0
      %2149 = vmatpush.bf16.msra.mxu0 0
      %2150 = vmatpush.bf16.msra.mxu0 0
      %2151 = vmatpush.bf16.msra.mxu0 0
      %2152 = vmatpush.bf16.msra.mxu0 0
      %2153 = vmatpush.bf16.msra.mxu0 0
      %2154 = vmatpush.bf16.msra.mxu0 %v2145
      %2155 = vmatmul.bf16.gmra.mxu0 %v2124
      %v2156 = vpop.f32.mrf.mxu0
      %v2157 = vadd.f32 0.0, %v2156
      %v2158 = vpop.f32.mrf.mxu0
      %v2159 = vadd.f32 0.0, %v2158
      %2160 = vmatmul.bf16.gmra.mxu0 %v2127
      %v2161 = vpop.f32.mrf.mxu0
      %v2162 = vadd.f32 0.0, %v2161
      %v2163 = vpop.f32.mrf.mxu0
      %v2164 = vadd.f32 0.0, %v2163
      %2165 = vmatmul.bf16.gmra.mxu0 %v2130
      %v2166 = vpop.f32.mrf.mxu0
      %v2167 = vadd.f32 0.0, %v2166
      %v2168 = vpop.f32.mrf.mxu0
      %v2169 = vadd.f32 0.0, %v2168
      %2170 = vmatmul.bf16.gmra.mxu0 %v2133
      %v2171 = vpop.f32.mrf.mxu0
      %v2172 = vadd.f32 0.0, %v2171
      %v2173 = vpop.f32.mrf.mxu0
      %v2174 = vadd.f32 0.0, %v2173
      %2175 = vmatmul.bf16.gmra.mxu0 %v2136
      %v2176 = vpop.f32.mrf.mxu0
      %v2177 = vadd.f32 0.0, %v2176
      %v2178 = vpop.f32.mrf.mxu0
      %v2179 = vadd.f32 0.0, %v2178
      %2180 = vmatmul.bf16.gmra.mxu0 %v2139
      %v2181 = vpop.f32.mrf.mxu0
      %v2182 = vadd.f32 0.0, %v2181
      %v2183 = vpop.f32.mrf.mxu0
      %v2184 = vadd.f32 0.0, %v2183
      %2185 = vmatmul.bf16.gmra.mxu0 %v2142
      %v2186 = vpop.f32.mrf.mxu0
      %v2187 = vadd.f32 0.0, %v2186
      %v2188 = vpop.f32.mrf.mxu0
      %2189 = vdwg.mxu0
      %v2190 = vadd.f32 %v1900, %v2157
      %v2191 = vadd.f32 %v1901, %v2159
      %v2192 = vadd.f32 %v1902, %v2162
      %v2193 = vadd.f32 %v1903, %v2164
      %v2194 = vadd.f32 %v1904, %v2167
      %v2195 = vadd.f32 %v1905, %v2169
      %v2196 = vadd.f32 %v1906, %v2172
      %v2197 = vadd.f32 %v1907, %v2174
      %v2198 = vadd.f32 %v1908, %v2177
      %v2199 = vadd.f32 %v1909, %v2179
      %v2200 = vadd.f32 %v1910, %v2182
      %v2201 = vadd.f32 %v1911, %v2184
      %v2202 = vadd.f32 %v1912, %v2187
      %v2203 = vld [vmem:[%s300 + $0x14] sm:$0xe]
      %s2204 = scalar_lea.vmem %s1, 32
      %v2205 = vld [vmem:[%s2204] sm:$0x7]
      %v2207 = vunpack.c.l.b16 %v2203
      %v2208 = vpack.c.b16 %v1944, %v2207
      %v2209 = vrot.slane %v2208, 1
      %v2210 = vrot.slane %v1958, 1
      %v2211 = vsel %vm633, %v2209, %v2210
      %v2212 = vrot.slane %v1959, 1
      %v2213 = vsel %vm633, %v2210, %v2212
      %v2214 = vrot.slane %v1960, 1
      %v2215 = vsel %vm633, %v2212, %v2214
      %v2216 = vrot.slane %v1961, 1
      %v2217 = vsel %vm633, %v2214, %v2216
      %v2218 = vrot.slane %v1962, 1
      %v2219 = vsel %vm633, %v2216, %v2218
      %v2220 = vrot.slane %v1963, 1
      %v2221 = vsel %vm633, %v2218, %v2220
      %v2223 = vsel %vm426, %v2211, 0
      %v2226 = vsel %vm426, %v2213, 0
      %v2229 = vsel %vm426, %v2215, 0
      %v2232 = vsel %vm426, %v2217, 0
      %v2235 = vsel %vm426, %v2219, 0
      %v2238 = vsel %vm426, %v2221, 0
      %v2241 = vsel %vm426, %v2220, 0
      %v2244 = vand.u32 %v2205, %v451
      %2246 = vmatpush.bf16.msra.mxu0 0
      %2247 = vmatpush.bf16.msra.mxu0 0
      %2248 = vmatpush.bf16.msra.mxu0 0
      %2249 = vmatpush.bf16.msra.mxu0 0
      %2250 = vmatpush.bf16.msra.mxu0 0
      %2251 = vmatpush.bf16.msra.mxu0 0
      %2252 = vmatpush.bf16.msra.mxu0 0
      %2253 = vmatpush.bf16.msra.mxu0 %v2244
      %2254 = vmatmul.bf16.gmra.mxu0 %v2223
      %v2255 = vpop.f32.mrf.mxu0
      %v2256 = vadd.f32 0.0, %v2255
      %v2257 = vpop.f32.mrf.mxu0
      %v2258 = vadd.f32 0.0, %v2257
      %2259 = vmatmul.bf16.gmra.mxu0 %v2226
      %v2260 = vpop.f32.mrf.mxu0
      %v2261 = vadd.f32 0.0, %v2260
      %v2262 = vpop.f32.mrf.mxu0
      %v2263 = vadd.f32 0.0, %v2262
      %2264 = vmatmul.bf16.gmra.mxu0 %v2229
      %v2265 = vpop.f32.mrf.mxu0
      %v2266 = vadd.f32 0.0, %v2265
      %v2267 = vpop.f32.mrf.mxu0
      %v2268 = vadd.f32 0.0, %v2267
      %2269 = vmatmul.bf16.gmra.mxu0 %v2232
      %v2270 = vpop.f32.mrf.mxu0
      %v2271 = vadd.f32 0.0, %v2270
      %v2272 = vpop.f32.mrf.mxu0
      %v2273 = vadd.f32 0.0, %v2272
      %2274 = vmatmul.bf16.gmra.mxu0 %v2235
      %v2275 = vpop.f32.mrf.mxu0
      %v2276 = vadd.f32 0.0, %v2275
      %v2277 = vpop.f32.mrf.mxu0
      %v2278 = vadd.f32 0.0, %v2277
      %2279 = vmatmul.bf16.gmra.mxu0 %v2238
      %v2280 = vpop.f32.mrf.mxu0
      %v2281 = vadd.f32 0.0, %v2280
      %v2282 = vpop.f32.mrf.mxu0
      %v2283 = vadd.f32 0.0, %v2282
      %2284 = vmatmul.bf16.gmra.mxu0 %v2241
      %v2285 = vpop.f32.mrf.mxu0
      %v2286 = vadd.f32 0.0, %v2285
      %v2287 = vpop.f32.mrf.mxu0
      %2288 = vdwg.mxu0
      %v2289 = vadd.f32 %v2087, %v2256
      %v2290 = vadd.f32 %v2088, %v2258
      %v2291 = vadd.f32 %v2089, %v2261
      %v2292 = vadd.f32 %v2090, %v2263
      %v2293 = vadd.f32 %v2091, %v2266
      %v2294 = vadd.f32 %v2092, %v2268
      %v2295 = vadd.f32 %v2093, %v2271
      %v2296 = vadd.f32 %v2094, %v2273
      %v2297 = vadd.f32 %v2095, %v2276
      %v2298 = vadd.f32 %v2096, %v2278
      %v2299 = vadd.f32 %v2097, %v2281
      %v2300 = vadd.f32 %v2098, %v2283
      %v2301 = vadd.f32 %v2099, %v2286
      %v2302 = vld [vmem:[%s300 + $0x4c] sm:$0xf]
      %s2303 = scalar_lea.vmem %s3, 32
      %v2304 = vld [vmem:[%s2303] sm:$0x7]
      %v2306 = vunpack.c.l.b16 %v2302
      %v2307 = vpack.c.b16 %v1801, %v1800
      %v2308 = vpack.c.b16 %v1803, %v1802
      %v2309 = vpack.c.b16 %v1805, %v1804
      %v2310 = vpack.c.b16 %v1807, %v1806
      %v2311 = vpack.c.b16 %v1809, %v1808
      %v2312 = vpack.c.b16 %v1811, %v1810
      %v2313 = vpack.c.b16 %v2306, %v2306
      %v2315 = vsel %vm426, %v2307, 0
      %v2318 = vsel %vm426, %v2308, 0
      %v2321 = vsel %vm426, %v2309, 0
      %v2324 = vsel %vm426, %v2310, 0
      %v2327 = vsel %vm426, %v2311, 0
      %v2330 = vsel %vm426, %v2312, 0
      %v2333 = vsel %vm426, %v2313, 0
      %v2336 = vand.u32 %v2304, %v451
      %2338 = vmatpush.bf16.msra.mxu0 0
      %2339 = vmatpush.bf16.msra.mxu0 0
      %2340 = vmatpush.bf16.msra.mxu0 0
      %2341 = vmatpush.bf16.msra.mxu0 0
      %2342 = vmatpush.bf16.msra.mxu0 0
      %2343 = vmatpush.bf16.msra.mxu0 0
      %2344 = vmatpush.bf16.msra.mxu0 0
      %2345 = vmatpush.bf16.msra.mxu0 %v2336
      %2346 = vmatmul.bf16.gmra.mxu0 %v2315
      %v2347 = vpop.f32.mrf.mxu0
      %v2348 = vadd.f32 0.0, %v2347
      %v2349 = vpop.f32.mrf.mxu0
      %v2350 = vadd.f32 0.0, %v2349
      %2351 = vmatmul.bf16.gmra.mxu0 %v2318
      %v2352 = vpop.f32.mrf.mxu0
      %v2353 = vadd.f32 0.0, %v2352
      %v2354 = vpop.f32.mrf.mxu0
      %v2355 = vadd.f32 0.0, %v2354
      %2356 = vmatmul.bf16.gmra.mxu0 %v2321
      %v2357 = vpop.f32.mrf.mxu0
      %v2358 = vadd.f32 0.0, %v2357
      %v2359 = vpop.f32.mrf.mxu0
      %v2360 = vadd.f32 0.0, %v2359
      %2361 = vmatmul.bf16.gmra.mxu0 %v2324
      %v2362 = vpop.f32.mrf.mxu0
      %v2363 = vadd.f32 0.0, %v2362
      %v2364 = vpop.f32.mrf.mxu0
      %v2365 = vadd.f32 0.0, %v2364
      %2366 = vmatmul.bf16.gmra.mxu0 %v2327
      %v2367 = vpop.f32.mrf.mxu0
      %v2368 = vadd.f32 0.0, %v2367
      %v2369 = vpop.f32.mrf.mxu0
      %v2370 = vadd.f32 0.0, %v2369
      %2371 = vmatmul.bf16.gmra.mxu0 %v2330
      %v2372 = vpop.f32.mrf.mxu0
      %v2373 = vadd.f32 0.0, %v2372
      %v2374 = vpop.f32.mrf.mxu0
      %v2375 = vadd.f32 0.0, %v2374
      %2376 = vmatmul.bf16.gmra.mxu0 %v2333
      %v2377 = vpop.f32.mrf.mxu0
      %v2378 = vadd.f32 0.0, %v2377
      %v2379 = vpop.f32.mrf.mxu0
      %2380 = vdwg.mxu0
      %v2381 = vadd.f32 %v2190, %v2348
      %v2382 = vadd.f32 %v2191, %v2350
      %v2383 = vadd.f32 %v2192, %v2353
      %v2384 = vadd.f32 %v2193, %v2355
      %v2385 = vadd.f32 %v2194, %v2358
      %v2386 = vadd.f32 %v2195, %v2360
      %v2387 = vadd.f32 %v2196, %v2363
      %v2388 = vadd.f32 %v2197, %v2365
      %v2389 = vadd.f32 %v2198, %v2368
      %v2390 = vadd.f32 %v2199, %v2370
      %v2391 = vadd.f32 %v2200, %v2373
      %v2392 = vadd.f32 %v2201, %v2375
      %v2393 = vadd.f32 %v2202, %v2378
      %v2394 = vld [vmem:[%s2] sm:$0x1]
      %v2396 = vperm.slane %v2394, 0
      %v2398 = vadd.f32 %v2289, %v2396
      %v2399 = vadd.f32 %v2290, %v2396
      %v2400 = vadd.f32 %v2291, %v2396
      %v2401 = vadd.f32 %v2292, %v2396
      %v2402 = vadd.f32 %v2293, %v2396
      %v2403 = vadd.f32 %v2294, %v2396
      %v2404 = vadd.f32 %v2295, %v2396
      %v2405 = vadd.f32 %v2296, %v2396
      %v2406 = vadd.f32 %v2297, %v2396
      %v2407 = vadd.f32 %v2298, %v2396
      %v2408 = vadd.f32 %v2299, %v2396
      %v2409 = vadd.f32 %v2300, %v2396
      %v2410 = vadd.f32 %v2301, %v2396
      %v2411 = vmax.f32 %v2398, 0.0
      %v2412 = vmax.f32 %v2399, 0.0
      %v2413 = vmax.f32 %v2400, 0.0
      %v2414 = vmax.f32 %v2401, 0.0
      %v2415 = vmax.f32 %v2402, 0.0
      %v2416 = vmax.f32 %v2403, 0.0
      %v2417 = vmax.f32 %v2404, 0.0
      %v2418 = vmax.f32 %v2405, 0.0
      %v2419 = vmax.f32 %v2406, 0.0
      %v2420 = vmax.f32 %v2407, 0.0
      %v2421 = vmax.f32 %v2408, 0.0
      %v2422 = vmax.f32 %v2409, 0.0
      %v2423 = vmax.f32 %v2410, 0.0
      %v2424 = vpack.c.bf16 %v2412, %v2411
      %v2425 = vpack.c.bf16 %v2414, %v2413
      %v2426 = vpack.c.bf16 %v2416, %v2415
      %v2427 = vpack.c.bf16 %v2418, %v2417
      %v2428 = vpack.c.bf16 %v2420, %v2419
      %v2429 = vpack.c.bf16 %v2422, %v2421
      %v2430 = vpack.c.bf16 %v2423, %v2423
      %v2431 = vld [vmem:[%s4] sm:$0x1]
      %v2433 = vperm.slane %v2431, 0
      %v2435 = vadd.f32 %v2381, %v2433
      %v2436 = vadd.f32 %v2382, %v2433
      %v2437 = vadd.f32 %v2383, %v2433
      %v2438 = vadd.f32 %v2384, %v2433
      %v2439 = vadd.f32 %v2385, %v2433
      %v2440 = vadd.f32 %v2386, %v2433
      %v2441 = vadd.f32 %v2387, %v2433
      %v2442 = vadd.f32 %v2388, %v2433
      %v2443 = vadd.f32 %v2389, %v2433
      %v2444 = vadd.f32 %v2390, %v2433
      %v2445 = vadd.f32 %v2391, %v2433
      %v2446 = vadd.f32 %v2392, %v2433
      %v2447 = vadd.f32 %v2393, %v2433
      %v2448 = vmax.f32 %v2435, 0.0
      %v2449 = vmax.f32 %v2436, 0.0
      %v2450 = vmax.f32 %v2437, 0.0
      %v2451 = vmax.f32 %v2438, 0.0
      %v2452 = vmax.f32 %v2439, 0.0
      %v2453 = vmax.f32 %v2440, 0.0
      %v2454 = vmax.f32 %v2441, 0.0
      %v2455 = vmax.f32 %v2442, 0.0
      %v2456 = vmax.f32 %v2443, 0.0
      %v2457 = vmax.f32 %v2444, 0.0
      %v2458 = vmax.f32 %v2445, 0.0
      %v2459 = vmax.f32 %v2446, 0.0
      %v2460 = vmax.f32 %v2447, 0.0
      %v2461 = vpack.c.bf16 %v2449, %v2448
      %v2462 = vpack.c.bf16 %v2451, %v2450
      %v2463 = vpack.c.bf16 %v2453, %v2452
      %v2464 = vpack.c.bf16 %v2455, %v2454
      %v2465 = vpack.c.bf16 %v2457, %v2456
      %v2466 = vpack.c.bf16 %v2459, %v2458
      %v2467 = vpack.c.bf16 %v2460, %v2460
      %v2468 = vld [vmem:[%s5] sm:$0xf]
      %v2469 = vld [vmem:[%s5 + $0x4] sm:$0x3]
      %v2470 = vld [vmem:[%s6] sm:$0x7]
      %vm2471 = vcmask 48128
      %v2473 = vsel %vm2471, %v2461, 0
      %v2476 = vsel %vm2471, %v2462, 0
      %v2479 = vsel %vm2471, %v2463, 0
      %v2482 = vsel %vm2471, %v2464, 0
      %v2485 = vsel %vm2471, %v2465, 0
      %v2488 = vsel %vm2471, %v2466, 0
      %v2491 = vsel %vm2471, %v2467, 0
      %v2494 = vsel %vm449, %v2470, 0
      %2496 = vmatpush.bf16.msra.mxu0 0
      %2497 = vmatpush.bf16.msra.mxu0 0
      %2498 = vmatpush.bf16.msra.mxu0 0
      %2499 = vmatpush.bf16.msra.mxu0 0
      %2500 = vmatpush.bf16.msra.mxu0 0
      %2501 = vmatpush.bf16.msra.mxu0 0
      %2502 = vmatpush.bf16.msra.mxu0 0
      %2503 = vmatpush.bf16.msra.mxu0 %v2494
      %2504 = vmatmul.bf16.gmra.mxu0 %v2473
      %v2505 = vpop.f32.mrf.mxu0
      %v2506 = vadd.f32 0.0, %v2505
      %v2507 = vpop.f32.mrf.mxu0
      %v2508 = vadd.f32 0.0, %v2507
      %2509 = vmatmul.bf16.gmra.mxu0 %v2476
      %v2510 = vpop.f32.mrf.mxu0
      %v2511 = vadd.f32 0.0, %v2510
      %v2512 = vpop.f32.mrf.mxu0
      %v2513 = vadd.f32 0.0, %v2512
      %2514 = vmatmul.bf16.gmra.mxu0 %v2479
      %v2515 = vpop.f32.mrf.mxu0
      %v2516 = vadd.f32 0.0, %v2515
      %v2517 = vpop.f32.mrf.mxu0
      %v2518 = vadd.f32 0.0, %v2517
      %2519 = vmatmul.bf16.gmra.mxu0 %v2482
      %v2520 = vpop.f32.mrf.mxu0
      %v2521 = vadd.f32 0.0, %v2520
      %v2522 = vpop.f32.mrf.mxu0
      %v2523 = vadd.f32 0.0, %v2522
      %2524 = vmatmul.bf16.gmra.mxu0 %v2485
      %v2525 = vpop.f32.mrf.mxu0
      %v2526 = vadd.f32 0.0, %v2525
      %v2527 = vpop.f32.mrf.mxu0
      %v2528 = vadd.f32 0.0, %v2527
      %2529 = vmatmul.bf16.gmra.mxu0 %v2488
      %v2530 = vpop.f32.mrf.mxu0
      %v2531 = vadd.f32 0.0, %v2530
      %v2532 = vpop.f32.mrf.mxu0
      %v2533 = vadd.f32 0.0, %v2532
      %2534 = vmatmul.bf16.gmra.mxu0 %v2491
      %v2535 = vpop.f32.mrf.mxu0
      %v2536 = vadd.f32 0.0, %v2535
      %v2537 = vpop.f32.mrf.mxu0
      %2538 = vdwg.mxu0
      %v2541 = vunpack.c.l.b16 %v2468
      %v2542 = vunpack.c.l.b16 %v2469
      %v2543 = vpack.c.b16 %v2542, %v2541
      %vm2544 = vcmask 97280
      %v2546 = vsel %vm2544, %v2424, 0
      %v2549 = vsel %vm2544, %v2425, 0
      %v2552 = vsel %vm2544, %v2426, 0
      %v2555 = vsel %vm2544, %v2427, 0
      %v2558 = vsel %vm2544, %v2428, 0
      %v2561 = vsel %vm2544, %v2429, 0
      %v2564 = vsel %vm2544, %v2430, 0
      %vm2566 = vcmask 1045504
      %v2568 = vsel %vm2566, %v2543, 0
      %2570 = vmatpush.bf16.msra.mxu0 0
      %2571 = vmatpush.bf16.msra.mxu0 0
      %2572 = vmatpush.bf16.msra.mxu0 0
      %2573 = vmatpush.bf16.msra.mxu0 0
      %2574 = vmatpush.bf16.msra.mxu0 0
      %2575 = vmatpush.bf16.msra.mxu0 0
      %2576 = vmatpush.bf16.msra.mxu0 0
      %2577 = vmatpush.bf16.msra.mxu0 %v2568
      %2578 = vmatmul.bf16.gmra.mxu0 %v2546
      %v2579 = vpop.f32.mrf.mxu0
      %v2580 = vadd.f32 %v2506, %v2579
      %v2581 = vpop.f32.mrf.mxu0
      %v2582 = vadd.f32 %v2508, %v2581
      %2583 = vmatmul.bf16.gmra.mxu0 %v2549
      %v2584 = vpop.f32.mrf.mxu0
      %v2585 = vadd.f32 %v2511, %v2584
      %v2586 = vpop.f32.mrf.mxu0
      %v2587 = vadd.f32 %v2513, %v2586
      %2588 = vmatmul.bf16.gmra.mxu0 %v2552
      %v2589 = vpop.f32.mrf.mxu0
      %v2590 = vadd.f32 %v2516, %v2589
      %v2591 = vpop.f32.mrf.mxu0
      %v2592 = vadd.f32 %v2518, %v2591
      %2593 = vmatmul.bf16.gmra.mxu0 %v2555
      %v2594 = vpop.f32.mrf.mxu0
      %v2595 = vadd.f32 %v2521, %v2594
      %v2596 = vpop.f32.mrf.mxu0
      %v2597 = vadd.f32 %v2523, %v2596
      %2598 = vmatmul.bf16.gmra.mxu0 %v2558
      %v2599 = vpop.f32.mrf.mxu0
      %v2600 = vadd.f32 %v2526, %v2599
      %v2601 = vpop.f32.mrf.mxu0
      %v2602 = vadd.f32 %v2528, %v2601
      %2603 = vmatmul.bf16.gmra.mxu0 %v2561
      %v2604 = vpop.f32.mrf.mxu0
      %v2605 = vadd.f32 %v2531, %v2604
      %v2606 = vpop.f32.mrf.mxu0
      %v2607 = vadd.f32 %v2533, %v2606
      %2608 = vmatmul.bf16.gmra.mxu0 %v2564
      %v2609 = vpop.f32.mrf.mxu0
      %v2610 = vadd.f32 %v2536, %v2609
      %v2611 = vpop.f32.mrf.mxu0
      %2612 = vdwg.mxu0
      %v2613 = vld [vmem:[%s7] sm:$0x1]
      %v2615 = vperm.slane %v2613, 0
      %v2617 = vadd.f32 %v2580, %v2615
      %v2618 = vadd.f32 %v2582, %v2615
      %v2619 = vadd.f32 %v2585, %v2615
      %v2620 = vadd.f32 %v2587, %v2615
      %v2621 = vadd.f32 %v2590, %v2615
      %v2622 = vadd.f32 %v2592, %v2615
      %v2623 = vadd.f32 %v2595, %v2615
      %v2624 = vadd.f32 %v2597, %v2615
      %v2625 = vadd.f32 %v2600, %v2615
      %v2626 = vadd.f32 %v2602, %v2615
      %v2627 = vadd.f32 %v2605, %v2615
      %v2628 = vadd.f32 %v2607, %v2615
      %v2629 = vadd.f32 %v2610, %v2615
      %v2630 = vmax.f32 %v2617, 0.0
      %v2631 = vmax.f32 %v2618, 0.0
      %v2632 = vmax.f32 %v2619, 0.0
      %v2633 = vmax.f32 %v2620, 0.0
      %v2634 = vmax.f32 %v2621, 0.0
      %v2635 = vmax.f32 %v2622, 0.0
      %v2636 = vmax.f32 %v2623, 0.0
      %v2637 = vmax.f32 %v2624, 0.0
      %v2638 = vmax.f32 %v2625, 0.0
      %v2639 = vmax.f32 %v2626, 0.0
      %v2640 = vmax.f32 %v2627, 0.0
      %v2641 = vmax.f32 %v2628, 0.0
      %v2642 = vmax.f32 %v2629, 0.0
      %v2643 = vpack.c.bf16 %v2630, %v2630
      %v2644 = vpack.c.bf16 %v2631, %v2631
      %v2645 = vpack.c.bf16 %v2632, %v2632
      %v2646 = vpack.c.bf16 %v2633, %v2633
      %v2647 = vpack.c.bf16 %v2634, %v2634
      %v2648 = vpack.c.bf16 %v2635, %v2635
      %v2649 = vpack.c.bf16 %v2636, %v2636
      %v2650 = vpack.c.bf16 %v2637, %v2637
      %v2651 = vpack.c.bf16 %v2638, %v2638
      %v2652 = vpack.c.bf16 %v2639, %v2639
      %v2653 = vpack.c.bf16 %v2640, %v2640
      %v2654 = vpack.c.bf16 %v2641, %v2641
      %v2655 = vpack.c.bf16 %v2642, %v2642
      %vm2656 = vcmask 44032
      %2657 = vst.msk [vmem:[%s305] sm:$0xf] %vm2656, %v2643
      %2658 = vst.msk [vmem:[%s305 + $0x4] sm:$0xf] %vm2656, %v2644
      %2659 = vst.msk [vmem:[%s305 + $0x8] sm:$0xf] %vm2656, %v2645
      %2660 = vst.msk [vmem:[%s305 + $0xc] sm:$0xf] %vm2656, %v2646
      %2661 = vst.msk [vmem:[%s305 + $0x10] sm:$0xf] %vm2656, %v2647
      %2662 = vst.msk [vmem:[%s305 + $0x14] sm:$0xf] %vm2656, %v2648
      %2663 = vst.msk [vmem:[%s305 + $0x18] sm:$0xf] %vm2656, %v2649
      %2664 = vst.msk [vmem:[%s305 + $0x1c] sm:$0xf] %vm2656, %v2650
      %2665 = vst.msk [vmem:[%s305 + $0x20] sm:$0xf] %vm2656, %v2651
      %2666 = vst.msk [vmem:[%s305 + $0x24] sm:$0xf] %vm2656, %v2652
      %2667 = vst.msk [vmem:[%s305 + $0x28] sm:$0xf] %vm2656, %v2653
      %2668 = vst.msk [vmem:[%s305 + $0x2c] sm:$0xf] %vm2656, %v2654
      %2669 = vst.msk [vmem:[%s305 + $0x30] sm:$0xf] %vm2656, %v2655
      %p2670 = scmp.lt.s32.totalorder %s19, 1
      %s2671 = scalar_select %p2670, %s19, 1
      %s2672 = smul.addr %s2671, 13
      %s2673 = smul.addr %s2672, 4
      %s2674 = scalar_lea.vmem %s8, %s2673
      // Predicated region
      $region53: #{tpu_custom_call.1} parent=51 // pred_check
        %p2675 = pneg %p210
      $region54: #{tpu_custom_call.1} parent=51 // pred_check_branch
        %2677 = sbr.rel (%p2675) target = $region56
      $region55: #{tpu_custom_call.1} parent=51 // pred_region
        _
      $region56: #{tpu_custom_call.1} parent=51 // pred_fallthru
        _
    $region52: #{tpu_custom_call.1} parent=5 // pred_fallthru
      _
    %p2678 = scmp.le.s32.totalorder 2, %s14
    // Predicated region
    $region57: #{tpu_custom_call.1} parent=5 // pred_check
      %p2679 = pneg %p2678
    $region58: #{tpu_custom_call.1} parent=5 // pred_check_branch
      %2681 = sbr.rel (%p2679) target = $region60
    $region59: #{tpu_custom_call.1} parent=5 // pred_region
      %s2682 = ssub.s32 %s14, 2
      // Predicated region
      $region61: #{tpu_custom_call.1} parent=59 // pred_check
        %p2683 = pneg %p216
      $region62: #{tpu_custom_call.1} parent=59 // pred_check_branch
        %2685 = sbr.rel (%p2683) target = $region64
      $region63: #{tpu_custom_call.1} parent=59 // pred_region
        %p2686 = scmp.lt.s32.totalorder %s20, 1
        %s2687 = scalar_select %p2686, %s20, 1
        %s2688 = smul.addr %s2687, 13
        %s2689 = smul.addr %s2688, 4
        %s2690 = scalar_lea.vmem %s8, %s2689
      $region64: #{tpu_custom_call.1} parent=59 // pred_fallthru
        _
    $region60: #{tpu_custom_call.1} parent=5 // pred_fallthru
      _
  $region6: #{tpu_custom_call.1} parent=0 // loop_footer
    %s18 = sadd.s32 1, %s14
  $region7: #{tpu_custom_call.1} parent=0 // loop_footer_branch
    %13 = sbr.rel target = $region3
  $region8: #{tpu_custom_call.1} parent=0 // loop_exit
    _

</llo_original>
